<compile_context>
chip_gen: v7x
topology: tpu7x:2x2x1
jax: 0.10.0
libtpu: 0.0.40
codegen_flags: <defaults>
</compile_context>

<pallas_src>
import functools
import math

import jax
import jax.numpy as jnp
from jax import lax
from jax.experimental import pallas as pl
from jax.experimental.pallas import tpu as pltpu


def _layer_norm(x, gamma, beta, eps):
    mean = jnp.mean(x, axis=-1, keepdims=True)
    xc = x - mean
    var = jnp.mean(xc * xc, axis=-1, keepdims=True)
    return xc * lax.rsqrt(var + eps) * gamma + beta


def _encoder_layer_kernel(x_ref, w_in_ref, b_in_ref, w_o_ref, b_o_ref,
                          w1_ref, b1_ref, w2_ref, b2_ref,
                          g1_ref, bt1_ref, g2_ref, bt2_ref, o_ref,
                          *, batch, nhead, eps):
    T, D = x_ref.shape                                  # T = seq * batch (seq-major rows)
    hd = D // nhead
    f32 = jnp.float32
    cdt = w_in_ref.dtype                                # bf16 compute dtype (pre-cast weights)

    x = x_ref[...].astype(f32)                          # (T, D) residual stream, f32

    # ---- fused QKV projection (q scale already folded into w_in/b_in) ----
    qkv = jnp.dot(x.astype(cdt), w_in_ref[...],
                  preferred_element_type=f32) + b_in_ref[...]       # (T, 3D) f32
    # Lane slices at multiples of 128 -> no sub-vreg relayout; cast each operand once.
    q = qkv[:, :D].astype(cdt)
    k = qkv[:, D:2 * D].astype(cdt)
    v = qkv[:, 2 * D:].astype(cdt)

    # ---- cross-batch attention mask ----
    # Token row r of the seq-major flatten belongs to batch (r % batch); a token may
    # only attend within its own batch, so mask cross-batch score entries to -inf-ish.
    rows = lax.broadcasted_iota(jnp.int32, (T, T), 0)
    cols = lax.broadcasted_iota(jnp.int32, (T, T), 1)
    same_batch = (rows % batch) == (cols % batch)
    neg_big = jnp.float32(-1e30)

    # ---- per-head scaled-dot-product attention (nhead is small & static) ----
    heads = []
    for h in range(nhead):
        sl = slice(h * hd, (h + 1) * hd)
        scores = lax.dot_general(q[:, sl], k[:, sl], (((1,), (1,)), ((), ())),
                                 preferred_element_type=f32)        # (T, T)
        scores = jnp.where(same_batch, scores, neg_big)
        scores = scores - jnp.max(scores, axis=-1, keepdims=True)
        p = jnp.exp(scores)
        p = p * pl.reciprocal(jnp.sum(p, axis=-1, keepdims=True), approx=True)
        # TODO(synk): attention-weight dropout is identity in eval mode.
        heads.append(jnp.dot(p.astype(cdt), v[:, sl],
                             preferred_element_type=f32))           # (T, hd)

    # ---- single full-K output projection ----
    attn = jnp.concatenate(heads, axis=-1).astype(cdt)              # (T, D)
    sa = jnp.dot(attn, w_o_ref[...], preferred_element_type=f32) + b_o_ref[...]

    # ---- residual + LayerNorm1 (post-norm); residual dropout == identity in eval ----
    h1 = _layer_norm(x + sa, g1_ref[...], bt1_ref[...], eps)

    # ---- feed-forward block: Linear -> ReLU -> Linear ----
    f = jnp.dot(h1.astype(cdt), w1_ref[...],
                preferred_element_type=f32) + b1_ref[...]
    f = jnp.maximum(f, 0.0)
    f = jnp.dot(f.astype(cdt), w2_ref[...],
                preferred_element_type=f32) + b2_ref[...]

    # ---- residual + LayerNorm2 ----
    o_ref[...] = _layer_norm(h1 + f, g2_ref[...], bt2_ref[...], eps).astype(o_ref.dtype)


def transformer_encoder_layer(src, kp, *, nhead, eps=1e-5):
    """Fused TransformerEncoderLayer forward.

    src: (seq, batch, d_model) activations.
    kp:  kernel-ready params from prepare_params() (bf16 matmul weights, q-scale folded).
    """
    S, B, D = src.shape
    T = S * B
    F = kp["w1"].shape[1]
    assert D % nhead == 0

    # Contiguous reshape only (pure metadata, no transpose / no HBM shuffle).
    x2 = src.reshape(T, D)

    kernel = functools.partial(_encoder_layer_kernel, batch=B, nhead=nhead, eps=eps)

    flops = (2 * T * D * 3 * D                         # QKV projection
             + 4 * nhead * T * T * (D // nhead)        # scores + attn @ V (incl. masked pairs)
             + 2 * T * D * D                           # output projection
             + 4 * T * D * F)                          # FFN
    transcendentals = nhead * T * T + 2 * T            # softmax exp + LayerNorm rsqrt
    bytes_accessed = (2 * T * D * 4                    # activations in/out (f32)
                      + (3 * D * D + D * D + 2 * D * F) * 2      # bf16 weights
                      + (3 * D + D + F + D + 4 * D) * 4)         # biases + LN params

    # No grid: one step, every operand a whole-array VMEM block (<0.5 MiB total here).
    # TODO(synk): stream activations as bf16 if the surrounding model tolerates it.
    out = pl.pallas_call(
        kernel,
        out_shape=jax.ShapeDtypeStruct((T, D), src.dtype),
        compiler_params=pltpu.CompilerParams(vmem_limit_bytes=32 * 1024 * 1024),
        cost_estimate=pl.CostEstimate(
            flops=flops, transcendentals=transcendentals,
            bytes_accessed=bytes_accessed),
    )(x2, kp["w_in"], kp["b_in"], kp["w_o"], kp["b_o"],
      kp["w1"], kp["b1"], kp["w2"], kp["b2"],
      kp["g1"], kp["bt1"], kp["g2"], kp["bt2"])

    return out.reshape(S, B, D)


def init_params(key, d_model, dim_feedforward):
    """Deterministic PyTorch-style init (f32 master). Weights stored (in, out): y = x @ W + b."""
    D, F = d_model, dim_feedforward
    ks = jax.random.split(key, 8)

    def u(k, shape, fan_in):
        bound = 1.0 / math.sqrt(fan_in)
        return jax.random.uniform(k, shape, jnp.float32, -bound, bound)

    return {
        # MultiheadAttention: fused in_proj + out_proj
        "w_in": u(ks[0], (D, 3 * D), D), "b_in": u(ks[1], (1, 3 * D), D),
        "w_o": u(ks[2], (D, D), D),      "b_o": u(ks[3], (1, D), D),
        # FeedForwardLayer
        "w1": u(ks[4], (D, F), D),       "b1": u(ks[5], (1, F), D),
        "w2": u(ks[6], (F, D), F),       "b2": u(ks[7], (1, D), F),
        # LayerNorms (PyTorch default: gamma=1, beta=0)
        "g1": jnp.ones((1, D), jnp.float32), "bt1": jnp.zeros((1, D), jnp.float32),
        "g2": jnp.ones((1, D), jnp.float32), "bt2": jnp.zeros((1, D), jnp.float32),
    }


def prepare_params(params, *, nhead, compute_dtype=jnp.bfloat16):
    """One-time weight prep (outside the forward path):
       - fold the 1/sqrt(head_dim) q scale into the q columns of w_in / b_in,
       - cast matmul weights to bf16 (biases / LayerNorm params stay f32)."""
    D = params["w_in"].shape[0]
    hd = D // nhead
    s = 1.0 / math.sqrt(hd)
    scale = jnp.concatenate([jnp.full((D,), s, jnp.float32),
                             jnp.ones((2 * D,), jnp.float32)])[None, :]   # (1, 3D)
    return {
        "w_in": (params["w_in"] * scale).astype(compute_dtype),
        "b_in": params["b_in"] * scale,
        "w_o": params["w_o"].astype(compute_dtype),
        "b_o": params["b_o"],
        "w1": params["w1"].astype(compute_dtype),
        "b1": params["b1"],
        "w2": params["w2"].astype(compute_dtype),
        "b2": params["b2"],
        "g1": params["g1"], "bt1": params["bt1"],
        "g2": params["g2"], "bt2": params["bt2"],
    }


def reference_forward(src, params, *, nhead, eps=1e-5):
    """Pure-JAX f32 reference of TransformerEncoderLayer.forward (post-norm, eval, no masks)."""
    S, B, D = src.shape
    hd = D // nhead

    def ln(x, g, b):
        m = jnp.mean(x, axis=-1, keepdims=True)
        v = jnp.mean((x - m) ** 2, axis=-1, keepdims=True)
        return (x - m) / jnp.sqrt(v + eps) * g + b

    x = src.astype(jnp.float32)
    qkv = jnp.einsum("sbd,de->sbe", x, params["w_in"]) + params["b_in"]
    q, k, v = jnp.split(qkv, 3, axis=-1)
    q = q / math.sqrt(hd)

    def heads(t):  # (S, B, D) -> (B, H, S, hd)
        return t.reshape(S, B, nhead, hd).transpose(1, 2, 0, 3)

    qh, kh, vh = heads(q), heads(k), heads(v)
    scores = jnp.einsum("bhsd,bhtd->bhst", qh, kh)
    p = jax.nn.softmax(scores, axis=-1)
    attn = jnp.einsum("bhst,bhtd->bhsd", p, vh)
    attn = attn.transpose(2, 0, 1, 3).reshape(S, B, D)
    sa = jnp.einsum("sbd,de->sbe", attn, params["w_o"]) + params["b_o"]

    h1 = ln(x + sa, params["g1"], params["bt1"])
    f = jax.nn.relu(jnp.einsum("sbd,df->sbf", h1, params["w1"]) + params["b1"])
    f = jnp.einsum("sbf,fd->sbd", f, params["w2"]) + params["b2"]
    return ln(h1 + f, params["g2"], params["bt2"])


if __name__ == "__main__":
    key = jax.random.PRNGKey(0)
    S, B, D, H, F = 8, 2, 128, 4, 256   # seq, batch, d_model (lane-dense), nhead, dim_ff

    kx, kp_key = jax.random.split(key)
    src = jax.random.normal(kx, (S, B, D), dtype=jnp.float32)
    params = init_params(kp_key, D, F)
    kparams = prepare_params(params, nhead=H)          # one-time bf16 cast + q-scale fold

    fwd = jax.jit(functools.partial(transformer_encoder_layer, nhead=H))
    out = jax.block_until_ready(fwd(src, kparams))

    ref = reference_forward(src, params, nhead=H)
    assert out.shape == (S, B, D)
    # bf16 MXU operands / bf16-quantized weights with f32 accumulation vs. pure-f32 reference.
    assert jnp.allclose(out, ref, atol=5e-2, rtol=5e-2), float(jnp.max(jnp.abs(out - ref)))

    print("KERNEL_OK")
</pallas_src>

<mosaic_0001>
module attributes {stable_mosaic.version = 11 : i64} {
  func.func @_encoder_layer_kernel(%arg0: memref<16x128xf32, #tpu.memory_space<vmem>>, %arg1: memref<128x384xbf16, #tpu.memory_space<vmem>>, %arg2: memref<1x384xf32, #tpu.memory_space<vmem>>, %arg3: memref<128x128xbf16, #tpu.memory_space<vmem>>, %arg4: memref<1x128xf32, #tpu.memory_space<vmem>>, %arg5: memref<128x256xbf16, #tpu.memory_space<vmem>>, %arg6: memref<1x256xf32, #tpu.memory_space<vmem>>, %arg7: memref<256x128xbf16, #tpu.memory_space<vmem>>, %arg8: memref<1x128xf32, #tpu.memory_space<vmem>>, %arg9: memref<1x128xf32, #tpu.memory_space<vmem>>, %arg10: memref<1x128xf32, #tpu.memory_space<vmem>>, %arg11: memref<1x128xf32, #tpu.memory_space<vmem>>, %arg12: memref<1x128xf32, #tpu.memory_space<vmem>>, %arg13: memref<16x128xf32, #tpu.memory_space<vmem>>) attributes {dimension_semantics = [], scalar_prefetch = 0 : i64, scratch_operands = 0 : i64, tpu.core_type = #tpu.core_type<tc>} {
    %c0 = arith.constant 0 : index
    %c0_0 = arith.constant 0 : index
    %0 = vector.load %arg0[%c0, %c0_0] : memref<16x128xf32, #tpu.memory_space<vmem>>, vector<16x128xf32>
    %1 = arith.truncf %0 : vector<16x128xf32> to vector<16x128xbf16>
    %c0_1 = arith.constant 0 : index
    %c0_2 = arith.constant 0 : index
    %2 = vector.load %arg1[%c0_1, %c0_2] : memref<128x384xbf16, #tpu.memory_space<vmem>>, vector<128x384xbf16>
    %cst = arith.constant dense<0.000000e+00> : vector<16x384xf32>
    %3 = tpu.matmul %1, %2, %cst {dimension_numbers = #tpu.dot_dimension_numbers<[1], [0], [0], [1], [0, 0, 1, 1], [], []>} : vector<16x128xbf16>, vector<128x384xbf16>, vector<16x384xf32> -> vector<16x384xf32>
    %c0_3 = arith.constant 0 : index
    %c0_4 = arith.constant 0 : index
    %4 = vector.load %arg2[%c0_3, %c0_4] : memref<1x384xf32, #tpu.memory_space<vmem>>, vector<1x384xf32>
    %5 = vector.broadcast %4 : vector<1x384xf32> to vector<16x384xf32>
    %6 = arith.addf %3, %5 : vector<16x384xf32>
    %7 = vector.extract_strided_slice %6 {offsets = [0, 0], sizes = [16, 128], strides = [1, 1]} : vector<16x384xf32> to vector<16x128xf32>
    %8 = arith.truncf %7 : vector<16x128xf32> to vector<16x128xbf16>
    %9 = vector.extract_strided_slice %6 {offsets = [0, 128], sizes = [16, 128], strides = [1, 1]} : vector<16x384xf32> to vector<16x128xf32>
    %10 = arith.truncf %9 : vector<16x128xf32> to vector<16x128xbf16>
    %11 = vector.extract_strided_slice %6 {offsets = [0, 256], sizes = [16, 128], strides = [1, 1]} : vector<16x384xf32> to vector<16x128xf32>
    %12 = arith.truncf %11 : vector<16x128xf32> to vector<16x128xbf16>
    %13 = tpu.iota {dimensions = array<i32: 0>} : vector<16x16xi32>
    %14 = tpu.iota {dimensions = array<i32: 1>} : vector<16x16xi32>
    %c2_i32 = arith.constant 2 : i32
    %c0_i32 = arith.constant 0 : i32
    %15 = arith.cmpi eq, %c2_i32, %c0_i32 : i32
    %c1_i32 = arith.constant 1 : i32
    %16 = arith.select %15, %c1_i32, %c2_i32 : i32
    %17 = vector.broadcast %16 : i32 to vector<16x16xi32>
    %18 = arith.remsi %13, %17 : vector<16x16xi32>
    %c0_i32_5 = arith.constant 0 : i32
    %19 = vector.broadcast %c0_i32_5 : i32 to vector<16x16xi32>
    %20 = arith.cmpi ne, %18, %19 : vector<16x16xi32>
    %c0_i32_6 = arith.constant 0 : i32
    %21 = vector.broadcast %c0_i32_6 : i32 to vector<16x16xi32>
    %22 = arith.cmpi slt, %18, %21 : vector<16x16xi32>
    %c0_i32_7 = arith.constant 0 : i32
    %23 = arith.cmpi slt, %16, %c0_i32_7 : i32
    %24 = vector.broadcast %23 : i1 to vector<16x16xi1>
    %25 = vector.broadcast %24 : vector<16x16xi1> to vector<16x16xi1>
    %26 = arith.xori %22, %25 : vector<16x16xi1>
    %27 = arith.andi %26, %20 : vector<16x16xi1>
    %28 = vector.broadcast %16 : i32 to vector<16x16xi32>
    %29 = arith.addi %18, %28 : vector<16x16xi32>
    %30 = arith.select %27, %29, %18 : vector<16x16xi1>, vector<16x16xi32>
    %c2_i32_8 = arith.constant 2 : i32
    %c0_i32_9 = arith.constant 0 : i32
    %31 = arith.cmpi eq, %c2_i32_8, %c0_i32_9 : i32
    %c1_i32_10 = arith.constant 1 : i32
    %32 = arith.select %31, %c1_i32_10, %c2_i32_8 : i32
    %33 = vector.broadcast %32 : i32 to vector<16x16xi32>
    %34 = arith.remsi %14, %33 : vector<16x16xi32>
    %c0_i32_11 = arith.constant 0 : i32
    %35 = vector.broadcast %c0_i32_11 : i32 to vector<16x16xi32>
    %36 = arith.cmpi ne, %34, %35 : vector<16x16xi32>
    %c0_i32_12 = arith.constant 0 : i32
    %37 = vector.broadcast %c0_i32_12 : i32 to vector<16x16xi32>
    %38 = arith.cmpi slt, %34, %37 : vector<16x16xi32>
    %c0_i32_13 = arith.constant 0 : i32
    %39 = arith.cmpi slt, %32, %c0_i32_13 : i32
    %40 = vector.broadcast %39 : i1 to vector<16x16xi1>
    %41 = vector.broadcast %40 : vector<16x16xi1> to vector<16x16xi1>
    %42 = arith.xori %38, %41 : vector<16x16xi1>
    %43 = arith.andi %42, %36 : vector<16x16xi1>
    %44 = vector.broadcast %32 : i32 to vector<16x16xi32>
    %45 = arith.addi %34, %44 : vector<16x16xi32>
    %46 = arith.select %43, %45, %34 : vector<16x16xi1>, vector<16x16xi32>
    %47 = arith.cmpi eq, %30, %46 : vector<16x16xi32>
    %48 = vector.extract_strided_slice %8 {offsets = [0, 0], sizes = [16, 32], strides = [1, 1]} : vector<16x128xbf16> to vector<16x32xbf16>
    %49 = vector.extract_strided_slice %10 {offsets = [0, 0], sizes = [16, 32], strides = [1, 1]} : vector<16x128xbf16> to vector<16x32xbf16>
    %cst_14 = arith.constant dense<0.000000e+00> : vector<16x16xf32>
    %50 = tpu.matmul %48, %49, %cst_14 {dimension_numbers = #tpu.dot_dimension_numbers<[1], [1], [0], [0], [0, 0, 1, 0], [], []>} : vector<16x32xbf16>, vector<16x32xbf16>, vector<16x16xf32> -> vector<16x16xf32>
    %cst_15 = arith.constant -1.000000e+30 : f32
    %51 = vector.broadcast %cst_15 : f32 to vector<16x16xf32>
    %52 = arith.select %47, %50, %51 : vector<16x16xi1>, vector<16x16xf32>
    %cst_16 = arith.constant dense<0xFF800000> : vector<16xf32>
    %53 = vector.multi_reduction <maximumf>, %52, %cst_16 [1] : vector<16x16xf32> to vector<16xf32>
    %54 = vector.shape_cast %53 : vector<16xf32> to vector<16x1xf32>
    %55 = vector.broadcast %54 : vector<16x1xf32> to vector<16x16xf32>
    %56 = arith.subf %52, %55 : vector<16x16xf32>
    %57 = math.exp %56 : vector<16x16xf32>
    %cst_17 = arith.constant dense<0.000000e+00> : vector<16xf32>
    %58 = vector.multi_reduction <add>, %57, %cst_17 [1] : vector<16x16xf32> to vector<16xf32>
    %59 = vector.shape_cast %58 : vector<16xf32> to vector<16x1xf32>
    %60 = tpu.reciprocal %59 {approx = true} : vector<16x1xf32> -> vector<16x1xf32>
    %61 = vector.broadcast %60 : vector<16x1xf32> to vector<16x16xf32>
    %62 = arith.mulf %57, %61 : vector<16x16xf32>
    %63 = arith.truncf %62 : vector<16x16xf32> to vector<16x16xbf16>
    %64 = vector.extract_strided_slice %12 {offsets = [0, 0], sizes = [16, 32], strides = [1, 1]} : vector<16x128xbf16> to vector<16x32xbf16>
    %cst_18 = arith.constant dense<0.000000e+00> : vector<16x32xf32>
    %65 = tpu.matmul %63, %64, %cst_18 {dimension_numbers = #tpu.dot_dimension_numbers<[1], [0], [0], [1], [0, 0, 1, 1], [], []>} : vector<16x16xbf16>, vector<16x32xbf16>, vector<16x32xf32> -> vector<16x32xf32>
    %66 = vector.extract_strided_slice %8 {offsets = [0, 32], sizes = [16, 32], strides = [1, 1]} : vector<16x128xbf16> to vector<16x32xbf16>
    %67 = vector.extract_strided_slice %10 {offsets = [0, 32], sizes = [16, 32], strides = [1, 1]} : vector<16x128xbf16> to vector<16x32xbf16>
    %cst_19 = arith.constant dense<0.000000e+00> : vector<16x16xf32>
    %68 = tpu.matmul %66, %67, %cst_19 {dimension_numbers = #tpu.dot_dimension_numbers<[1], [1], [0], [0], [0, 0, 1, 0], [], []>} : vector<16x32xbf16>, vector<16x32xbf16>, vector<16x16xf32> -> vector<16x16xf32>
    %cst_20 = arith.constant -1.000000e+30 : f32
    %69 = vector.broadcast %cst_20 : f32 to vector<16x16xf32>
    %70 = arith.select %47, %68, %69 : vector<16x16xi1>, vector<16x16xf32>
    %cst_21 = arith.constant dense<0xFF800000> : vector<16xf32>
    %71 = vector.multi_reduction <maximumf>, %70, %cst_21 [1] : vector<16x16xf32> to vector<16xf32>
    %72 = vector.shape_cast %71 : vector<16xf32> to vector<16x1xf32>
    %73 = vector.broadcast %72 : vector<16x1xf32> to vector<16x16xf32>
    %74 = arith.subf %70, %73 : vector<16x16xf32>
    %75 = math.exp %74 : vector<16x16xf32>
    %cst_22 = arith.constant dense<0.000000e+00> : vector<16xf32>
    %76 = vector.multi_reduction <add>, %75, %cst_22 [1] : vector<16x16xf32> to vector<16xf32>
    %77 = vector.shape_cast %76 : vector<16xf32> to vector<16x1xf32>
    %78 = tpu.reciprocal %77 {approx = true} : vector<16x1xf32> -> vector<16x1xf32>
    %79 = vector.broadcast %78 : vector<16x1xf32> to vector<16x16xf32>
    %80 = arith.mulf %75, %79 : vector<16x16xf32>
    %81 = arith.truncf %80 : vector<16x16xf32> to vector<16x16xbf16>
    %82 = vector.extract_strided_slice %12 {offsets = [0, 32], sizes = [16, 32], strides = [1, 1]} : vector<16x128xbf16> to vector<16x32xbf16>
    %cst_23 = arith.constant dense<0.000000e+00> : vector<16x32xf32>
    %83 = tpu.matmul %81, %82, %cst_23 {dimension_numbers = #tpu.dot_dimension_numbers<[1], [0], [0], [1], [0, 0, 1, 1], [], []>} : vector<16x16xbf16>, vector<16x32xbf16>, vector<16x32xf32> -> vector<16x32xf32>
    %84 = vector.extract_strided_slice %8 {offsets = [0, 64], sizes = [16, 32], strides = [1, 1]} : vector<16x128xbf16> to vector<16x32xbf16>
    %85 = vector.extract_strided_slice %10 {offsets = [0, 64], sizes = [16, 32], strides = [1, 1]} : vector<16x128xbf16> to vector<16x32xbf16>
    %cst_24 = arith.constant dense<0.000000e+00> : vector<16x16xf32>
    %86 = tpu.matmul %84, %85, %cst_24 {dimension_numbers = #tpu.dot_dimension_numbers<[1], [1], [0], [0], [0, 0, 1, 0], [], []>} : vector<16x32xbf16>, vector<16x32xbf16>, vector<16x16xf32> -> vector<16x16xf32>
    %cst_25 = arith.constant -1.000000e+30 : f32
    %87 = vector.broadcast %cst_25 : f32 to vector<16x16xf32>
    %88 = arith.select %47, %86, %87 : vector<16x16xi1>, vector<16x16xf32>
    %cst_26 = arith.constant dense<0xFF800000> : vector<16xf32>
    %89 = vector.multi_reduction <maximumf>, %88, %cst_26 [1] : vector<16x16xf32> to vector<16xf32>
    %90 = vector.shape_cast %89 : vector<16xf32> to vector<16x1xf32>
    %91 = vector.broadcast %90 : vector<16x1xf32> to vector<16x16xf32>
    %92 = arith.subf %88, %91 : vector<16x16xf32>
    %93 = math.exp %92 : vector<16x16xf32>
    %cst_27 = arith.constant dense<0.000000e+00> : vector<16xf32>
    %94 = vector.multi_reduction <add>, %93, %cst_27 [1] : vector<16x16xf32> to vector<16xf32>
    %95 = vector.shape_cast %94 : vector<16xf32> to vector<16x1xf32>
    %96 = tpu.reciprocal %95 {approx = true} : vector<16x1xf32> -> vector<16x1xf32>
    %97 = vector.broadcast %96 : vector<16x1xf32> to vector<16x16xf32>
    %98 = arith.mulf %93, %97 : vector<16x16xf32>
    %99 = arith.truncf %98 : vector<16x16xf32> to vector<16x16xbf16>
    %100 = vector.extract_strided_slice %12 {offsets = [0, 64], sizes = [16, 32], strides = [1, 1]} : vector<16x128xbf16> to vector<16x32xbf16>
    %cst_28 = arith.constant dense<0.000000e+00> : vector<16x32xf32>
    %101 = tpu.matmul %99, %100, %cst_28 {dimension_numbers = #tpu.dot_dimension_numbers<[1], [0], [0], [1], [0, 0, 1, 1], [], []>} : vector<16x16xbf16>, vector<16x32xbf16>, vector<16x32xf32> -> vector<16x32xf32>
    %102 = vector.extract_strided_slice %8 {offsets = [0, 96], sizes = [16, 32], strides = [1, 1]} : vector<16x128xbf16> to vector<16x32xbf16>
    %103 = vector.extract_strided_slice %10 {offsets = [0, 96], sizes = [16, 32], strides = [1, 1]} : vector<16x128xbf16> to vector<16x32xbf16>
    %cst_29 = arith.constant dense<0.000000e+00> : vector<16x16xf32>
    %104 = tpu.matmul %102, %103, %cst_29 {dimension_numbers = #tpu.dot_dimension_numbers<[1], [1], [0], [0], [0, 0, 1, 0], [], []>} : vector<16x32xbf16>, vector<16x32xbf16>, vector<16x16xf32> -> vector<16x16xf32>
    %cst_30 = arith.constant -1.000000e+30 : f32
    %105 = vector.broadcast %cst_30 : f32 to vector<16x16xf32>
    %106 = arith.select %47, %104, %105 : vector<16x16xi1>, vector<16x16xf32>
    %cst_31 = arith.constant dense<0xFF800000> : vector<16xf32>
    %107 = vector.multi_reduction <maximumf>, %106, %cst_31 [1] : vector<16x16xf32> to vector<16xf32>
    %108 = vector.shape_cast %107 : vector<16xf32> to vector<16x1xf32>
    %109 = vector.broadcast %108 : vector<16x1xf32> to vector<16x16xf32>
    %110 = arith.subf %106, %109 : vector<16x16xf32>
    %111 = math.exp %110 : vector<16x16xf32>
    %cst_32 = arith.constant dense<0.000000e+00> : vector<16xf32>
    %112 = vector.multi_reduction <add>, %111, %cst_32 [1] : vector<16x16xf32> to vector<16xf32>
    %113 = vector.shape_cast %112 : vector<16xf32> to vector<16x1xf32>
    %114 = tpu.reciprocal %113 {approx = true} : vector<16x1xf32> -> vector<16x1xf32>
    %115 = vector.broadcast %114 : vector<16x1xf32> to vector<16x16xf32>
    %116 = arith.mulf %111, %115 : vector<16x16xf32>
    %117 = arith.truncf %116 : vector<16x16xf32> to vector<16x16xbf16>
    %118 = vector.extract_strided_slice %12 {offsets = [0, 96], sizes = [16, 32], strides = [1, 1]} : vector<16x128xbf16> to vector<16x32xbf16>
    %cst_33 = arith.constant dense<0.000000e+00> : vector<16x32xf32>
    %119 = tpu.matmul %117, %118, %cst_33 {dimension_numbers = #tpu.dot_dimension_numbers<[1], [0], [0], [1], [0, 0, 1, 1], [], []>} : vector<16x16xbf16>, vector<16x32xbf16>, vector<16x32xf32> -> vector<16x32xf32>
    %120 = tpu.concatenate %65, %83, %101, %119 in 1 : vector<16x32xf32>, vector<16x32xf32>, vector<16x32xf32>, vector<16x32xf32> -> vector<16x128xf32>
    %121 = arith.truncf %120 : vector<16x128xf32> to vector<16x128xbf16>
    %c0_34 = arith.constant 0 : index
    %c0_35 = arith.constant 0 : index
    %122 = vector.load %arg3[%c0_34, %c0_35] : memref<128x128xbf16, #tpu.memory_space<vmem>>, vector<128x128xbf16>
    %cst_36 = arith.constant dense<0.000000e+00> : vector<16x128xf32>
    %123 = tpu.matmul %121, %122, %cst_36 {dimension_numbers = #tpu.dot_dimension_numbers<[1], [0], [0], [1], [0, 0, 1, 1], [], []>} : vector<16x128xbf16>, vector<128x128xbf16>, vector<16x128xf32> -> vector<16x128xf32>
    %c0_37 = arith.constant 0 : index
    %c0_38 = arith.constant 0 : index
    %124 = vector.load %arg4[%c0_37, %c0_38] : memref<1x128xf32, #tpu.memory_space<vmem>>, vector<1x128xf32>
    %125 = vector.broadcast %124 : vector<1x128xf32> to vector<16x128xf32>
    %126 = arith.addf %123, %125 : vector<16x128xf32>
    %127 = arith.addf %0, %126 : vector<16x128xf32>
    %c0_39 = arith.constant 0 : index
    %c0_40 = arith.constant 0 : index
    %128 = vector.load %arg9[%c0_39, %c0_40] : memref<1x128xf32, #tpu.memory_space<vmem>>, vector<1x128xf32>
    %c0_41 = arith.constant 0 : index
    %c0_42 = arith.constant 0 : index
    %129 = vector.load %arg10[%c0_41, %c0_42] : memref<1x128xf32, #tpu.memory_space<vmem>>, vector<1x128xf32>
    %cst_43 = arith.constant dense<0.000000e+00> : vector<16xf32>
    %130 = vector.multi_reduction <add>, %127, %cst_43 [1] : vector<16x128xf32> to vector<16xf32>
    %131 = vector.shape_cast %130 : vector<16xf32> to vector<16x1xf32>
    %cst_44 = arith.constant 1.280000e+02 : f32
    %132 = vector.broadcast %cst_44 : f32 to vector<16x1xf32>
    %133 = arith.divf %131, %132 : vector<16x1xf32>
    %134 = vector.broadcast %133 : vector<16x1xf32> to vector<16x128xf32>
    %135 = arith.subf %127, %134 : vector<16x128xf32>
    %136 = arith.mulf %135, %135 : vector<16x128xf32>
    %cst_45 = arith.constant dense<0.000000e+00> : vector<16xf32>
    %137 = vector.multi_reduction <add>, %136, %cst_45 [1] : vector<16x128xf32> to vector<16xf32>
    %138 = vector.shape_cast %137 : vector<16xf32> to vector<16x1xf32>
    %cst_46 = arith.constant 1.280000e+02 : f32
    %139 = vector.broadcast %cst_46 : f32 to vector<16x1xf32>
    %140 = arith.divf %138, %139 : vector<16x1xf32>
    %cst_47 = arith.constant 9.99999974E-6 : f32
    %141 = vector.broadcast %cst_47 : f32 to vector<16x1xf32>
    %142 = arith.addf %140, %141 : vector<16x1xf32>
    %143 = math.rsqrt %142 : vector<16x1xf32>
    %144 = vector.broadcast %143 : vector<16x1xf32> to vector<16x128xf32>
    %145 = arith.mulf %135, %144 : vector<16x128xf32>
    %146 = vector.broadcast %128 : vector<1x128xf32> to vector<16x128xf32>
    %147 = arith.mulf %145, %146 : vector<16x128xf32>
    %148 = vector.broadcast %129 : vector<1x128xf32> to vector<16x128xf32>
    %149 = arith.addf %147, %148 : vector<16x128xf32>
    %150 = arith.truncf %149 : vector<16x128xf32> to vector<16x128xbf16>
    %c0_48 = arith.constant 0 : index
    %c0_49 = arith.constant 0 : index
    %151 = vector.load %arg5[%c0_48, %c0_49] : memref<128x256xbf16, #tpu.memory_space<vmem>>, vector<128x256xbf16>
    %cst_50 = arith.constant dense<0.000000e+00> : vector<16x256xf32>
    %152 = tpu.matmul %150, %151, %cst_50 {dimension_numbers = #tpu.dot_dimension_numbers<[1], [0], [0], [1], [0, 0, 1, 1], [], []>} : vector<16x128xbf16>, vector<128x256xbf16>, vector<16x256xf32> -> vector<16x256xf32>
    %c0_51 = arith.constant 0 : index
    %c0_52 = arith.constant 0 : index
    %153 = vector.load %arg6[%c0_51, %c0_52] : memref<1x256xf32, #tpu.memory_space<vmem>>, vector<1x256xf32>
    %154 = vector.broadcast %153 : vector<1x256xf32> to vector<16x256xf32>
    %155 = arith.addf %152, %154 : vector<16x256xf32>
    %cst_53 = arith.constant 0.000000e+00 : f32
    %156 = vector.broadcast %cst_53 : f32 to vector<16x256xf32>
    %157 = arith.maximumf %155, %156 : vector<16x256xf32>
    %158 = arith.truncf %157 : vector<16x256xf32> to vector<16x256xbf16>
    %c0_54 = arith.constant 0 : index
    %c0_55 = arith.constant 0 : index
    %159 = vector.load %arg7[%c0_54, %c0_55] : memref<256x128xbf16, #tpu.memory_space<vmem>>, vector<256x128xbf16>
    %cst_56 = arith.constant dense<0.000000e+00> : vector<16x128xf32>
    %160 = tpu.matmul %158, %159, %cst_56 {dimension_numbers = #tpu.dot_dimension_numbers<[1], [0], [0], [1], [0, 0, 1, 1], [], []>} : vector<16x256xbf16>, vector<256x128xbf16>, vector<16x128xf32> -> vector<16x128xf32>
    %c0_57 = arith.constant 0 : index
    %c0_58 = arith.constant 0 : index
    %161 = vector.load %arg8[%c0_57, %c0_58] : memref<1x128xf32, #tpu.memory_space<vmem>>, vector<1x128xf32>
    %162 = vector.broadcast %161 : vector<1x128xf32> to vector<16x128xf32>
    %163 = arith.addf %160, %162 : vector<16x128xf32>
    %164 = arith.addf %149, %163 : vector<16x128xf32>
    %c0_59 = arith.constant 0 : index
    %c0_60 = arith.constant 0 : index
    %165 = vector.load %arg11[%c0_59, %c0_60] : memref<1x128xf32, #tpu.memory_space<vmem>>, vector<1x128xf32>
    %c0_61 = arith.constant 0 : index
    %c0_62 = arith.constant 0 : index
    %166 = vector.load %arg12[%c0_61, %c0_62] : memref<1x128xf32, #tpu.memory_space<vmem>>, vector<1x128xf32>
    %cst_63 = arith.constant dense<0.000000e+00> : vector<16xf32>
    %167 = vector.multi_reduction <add>, %164, %cst_63 [1] : vector<16x128xf32> to vector<16xf32>
    %168 = vector.shape_cast %167 : vector<16xf32> to vector<16x1xf32>
    %cst_64 = arith.constant 1.280000e+02 : f32
    %169 = vector.broadcast %cst_64 : f32 to vector<16x1xf32>
    %170 = arith.divf %168, %169 : vector<16x1xf32>
    %171 = vector.broadcast %170 : vector<16x1xf32> to vector<16x128xf32>
    %172 = arith.subf %164, %171 : vector<16x128xf32>
    %173 = arith.mulf %172, %172 : vector<16x128xf32>
    %cst_65 = arith.constant dense<0.000000e+00> : vector<16xf32>
    %174 = vector.multi_reduction <add>, %173, %cst_65 [1] : vector<16x128xf32> to vector<16xf32>
    %175 = vector.shape_cast %174 : vector<16xf32> to vector<16x1xf32>
    %cst_66 = arith.constant 1.280000e+02 : f32
    %176 = vector.broadcast %cst_66 : f32 to vector<16x1xf32>
    %177 = arith.divf %175, %176 : vector<16x1xf32>
    %cst_67 = arith.constant 9.99999974E-6 : f32
    %178 = vector.broadcast %cst_67 : f32 to vector<16x1xf32>
    %179 = arith.addf %177, %178 : vector<16x1xf32>
    %180 = math.rsqrt %179 : vector<16x1xf32>
    %181 = vector.broadcast %180 : vector<16x1xf32> to vector<16x128xf32>
    %182 = arith.mulf %172, %181 : vector<16x128xf32>
    %183 = vector.broadcast %165 : vector<1x128xf32> to vector<16x128xf32>
    %184 = arith.mulf %182, %183 : vector<16x128xf32>
    %185 = vector.broadcast %166 : vector<1x128xf32> to vector<16x128xf32>
    %186 = arith.addf %184, %185 : vector<16x128xf32>
    %c0_68 = arith.constant 0 : index
    %c0_69 = arith.constant 0 : index
    %187 = vector.load %arg13[%c0_68, %c0_69] : memref<16x128xf32, #tpu.memory_space<vmem>>, vector<16x128xf32>
    tpu.vector_store %arg13[%c0_68, %c0_69], %186 {strides = array<i32>} : memref<16x128xf32, #tpu.memory_space<vmem>>, vector<16x128xf32>,
    return
  }
}

</mosaic_0001>

<llo_original>
// kernel: transformer_encoder_layer.1
$region0: #{transformer_encoder_layer.1}
  #allocation0 [shape = 'u32[]', space=smem, size = 0x4, offset = 0x4, fixed_abs, tag = 'smem constant byte address 0x4 - core index']
  #allocation1 [shape = 'u32[144,128]{1,0:T(1,128)}', space=vmem, size = 0x12000, scoped, tag = 'internal scratch']
  %s0 = inlined_call_operand.hbm [shape: f32[16,128], index: 0, kind: input, shape index: {}]
  %s1 = inlined_call_operand.hbm [shape: bf16[128,384], index: 1, kind: input, shape index: {}]
  %s2 = inlined_call_operand.vmem [shape: f32[1,384], index: 2, kind: input, shape index: {}]
  %s3 = inlined_call_operand.hbm [shape: bf16[128,128], index: 3, kind: input, shape index: {}]
  %s4 = inlined_call_operand.vmem [shape: f32[1,128], index: 4, kind: input, shape index: {}]
  %s5 = inlined_call_operand.hbm [shape: bf16[128,256], index: 5, kind: input, shape index: {}]
  %s6 = inlined_call_operand.vmem [shape: f32[1,256], index: 6, kind: input, shape index: {}]
  %s7 = inlined_call_operand.hbm [shape: bf16[256,128], index: 7, kind: input, shape index: {}]
  %s8 = inlined_call_operand.vmem [shape: f32[1,128], index: 8, kind: input, shape index: {}]
  %s9 = inlined_call_operand.vmem [shape: f32[1,128], index: 9, kind: input, shape index: {}]
  %s10 = inlined_call_operand.vmem [shape: f32[1,128], index: 10, kind: input, shape index: {}]
  %s11 = inlined_call_operand.vmem [shape: f32[1,128], index: 11, kind: input, shape index: {}]
  %s12 = inlined_call_operand.vmem [shape: f32[1,128], index: 12, kind: input, shape index: {}]
  %s13 = inlined_call_operand.hbm [shape: f32[16,128], index: 13, kind: output, shape index: {}]
  %s14 = sld [smem:[#allocation0]]
  $region82: #{transformer_encoder_layer.1} parent=0
    _
  %s16 = ssub.s32 1, %s14
  %s17 = scalar_select 0, %s16, %s14
  $region1: #{transformer_encoder_layer.1} parent=0
    #allocation2 [shape = 'u8[8192]{0}', space=vmem, size = 0x2000, scoped, tag = 'input window, operand 0, single buffered']
    #allocation3 [shape = 's32[1]{0}', space=sflag, size = 0x4, scoped, tag = 'scoped memory for transformer_encoder_layer.1']
    #allocation4 [shape = 's32[1]{0}', space=sflag, size = 0x4, scoped, tag = 'scoped memory for transformer_encoder_layer.1']
    #allocation5 [shape = 'u8[98304]{0}', space=vmem, size = 0x18000, scoped, tag = 'input window, operand 1, single buffered']
    #allocation6 [shape = 's32[1]{0}', space=sflag, size = 0x4, scoped, tag = 'scoped memory for transformer_encoder_layer.1']
    #allocation7 [shape = 'u8[32768]{0}', space=vmem, size = 0x8000, scoped, tag = 'input window, operand 3, single buffered']
    #allocation8 [shape = 'u8[65536]{0}', space=vmem, size = 0x10000, scoped, tag = 'input window, operand 5, single buffered']
    #allocation9 [shape = 's32[1]{0}', space=sflag, size = 0x4, scoped, tag = 'scoped memory for transformer_encoder_layer.1']
    #allocation10 [shape = 'u8[65536]{0}', space=vmem, size = 0x10000, scoped, tag = 'input window, operand 7, single buffered']
    #allocation11 [shape = 'u8[8192]{0}', space=vmem, size = 0x2000, scoped, tag = 'output window, operand 0, single buffered']
    %18 = vsyncpa [#allocation3], 0
    %19 = vsyncpa [#allocation6], 0
    %20 = vsyncpa [#allocation9], 0
    %21 = vsyncpa [#allocation4], 0
    // Predicated region
    $region2: #{transformer_encoder_layer.1} parent=1 // pred_check
      _
    $region3: #{transformer_encoder_layer.1} parent=1 // pred_check_branch
      %23 = sbr.rel (0) target = $region5
    $region4: #{transformer_encoder_layer.1} parent=1 // pred_region
      %s25 = ssub.s32 256, 256
      %26 = vsyncadd [#allocation3], %s25
      %s27 = sshll.u32 [#allocation2], 4
      %s28 = int_to_ptr.vmem [resolvable:$true] %s27
      %33 = dma.hbm_to_vmem [thread:$0]  %s0, 256, %s28, [#allocation3], 128, 128, 8
    $region5: #{transformer_encoder_layer.1} parent=1 // pred_fallthru
      _
    // Predicated region
    $region6: #{transformer_encoder_layer.1} parent=1 // pred_check
      _
    $region7: #{transformer_encoder_layer.1} parent=1 // pred_check_branch
      %35 = sbr.rel (0) target = $region9
    $region8: #{transformer_encoder_layer.1} parent=1 // pred_region
      %s37 = ssub.s32 3072, 3072
      %38 = vsyncadd [#allocation6], %s37
      %s39 = sshll.u32 [#allocation5], 4
      %s40 = int_to_ptr.vmem [resolvable:$true] %s39
      %45 = dma.hbm_to_vmem [thread:$0]  %s1, 3072, %s40, [#allocation6], 192, 192, 12
    $region9: #{transformer_encoder_layer.1} parent=1 // pred_fallthru
      _
    // Predicated region
    $region10: #{transformer_encoder_layer.1} parent=1 // pred_check
      _
    $region11: #{transformer_encoder_layer.1} parent=1 // pred_check_branch
      %47 = sbr.rel (0) target = $region13
    $region12: #{transformer_encoder_layer.1} parent=1 // pred_region
      _
    $region13: #{transformer_encoder_layer.1} parent=1 // pred_fallthru
      _
    // Predicated region
    $region14: #{transformer_encoder_layer.1} parent=1 // pred_check
      _
    $region15: #{transformer_encoder_layer.1} parent=1 // pred_check_branch
      %49 = sbr.rel (0) target = $region17
    $region16: #{transformer_encoder_layer.1} parent=1 // pred_region
      %s51 = ssub.s32 1024, 1024
      %52 = vsyncadd [#allocation6], %s51
      %s53 = sshll.u32 [#allocation7], 4
      %s54 = int_to_ptr.vmem [resolvable:$true] %s53
      %59 = dma.hbm_to_vmem [thread:$0]  %s3, 1024, %s54, [#allocation6], 64, 64, 4
    $region17: #{transformer_encoder_layer.1} parent=1 // pred_fallthru
      _
    // Predicated region
    $region18: #{transformer_encoder_layer.1} parent=1 // pred_check
      _
    $region19: #{transformer_encoder_layer.1} parent=1 // pred_check_branch
      %61 = sbr.rel (0) target = $region21
    $region20: #{transformer_encoder_layer.1} parent=1 // pred_region
      _
    $region21: #{transformer_encoder_layer.1} parent=1 // pred_fallthru
      _
    // Predicated region
    $region22: #{transformer_encoder_layer.1} parent=1 // pred_check
      _
    $region23: #{transformer_encoder_layer.1} parent=1 // pred_check_branch
      %63 = sbr.rel (0) target = $region25
    $region24: #{transformer_encoder_layer.1} parent=1 // pred_region
      %s65 = ssub.s32 2048, 2048
      %66 = vsyncadd [#allocation9], %s65
      %s67 = sshll.u32 [#allocation8], 4
      %s68 = int_to_ptr.vmem [resolvable:$true] %s67
      %73 = dma.hbm_to_vmem [thread:$0]  %s5, 2048, %s68, [#allocation9], 128, 128, 8
    $region25: #{transformer_encoder_layer.1} parent=1 // pred_fallthru
      _
    // Predicated region
    $region26: #{transformer_encoder_layer.1} parent=1 // pred_check
      _
    $region27: #{transformer_encoder_layer.1} parent=1 // pred_check_branch
      %75 = sbr.rel (0) target = $region29
    $region28: #{transformer_encoder_layer.1} parent=1 // pred_region
      _
    $region29: #{transformer_encoder_layer.1} parent=1 // pred_fallthru
      _
    // Predicated region
    $region30: #{transformer_encoder_layer.1} parent=1 // pred_check
      _
    $region31: #{transformer_encoder_layer.1} parent=1 // pred_check_branch
      %77 = sbr.rel (0) target = $region33
    $region32: #{transformer_encoder_layer.1} parent=1 // pred_region
      %s79 = ssub.s32 2048, 2048
      %80 = vsyncadd [#allocation9], %s79
      %s81 = sshll.u32 [#allocation10], 4
      %s82 = int_to_ptr.vmem [resolvable:$true] %s81
      %87 = dma.hbm_to_vmem [thread:$0]  %s7, 2048, %s82, [#allocation9], 64, 64, 4
    $region33: #{transformer_encoder_layer.1} parent=1 // pred_fallthru
      _
    // Predicated region
    $region34: #{transformer_encoder_layer.1} parent=1 // pred_check
      _
    $region35: #{transformer_encoder_layer.1} parent=1 // pred_check_branch
      %89 = sbr.rel (0) target = $region37
    $region36: #{transformer_encoder_layer.1} parent=1 // pred_region
      _
    $region37: #{transformer_encoder_layer.1} parent=1 // pred_fallthru
      _
    // Predicated region
    $region38: #{transformer_encoder_layer.1} parent=1 // pred_check
      _
    $region39: #{transformer_encoder_layer.1} parent=1 // pred_check_branch
      %91 = sbr.rel (0) target = $region41
    $region40: #{transformer_encoder_layer.1} parent=1 // pred_region
      _
    $region41: #{transformer_encoder_layer.1} parent=1 // pred_fallthru
      _
    // Predicated region
    $region42: #{transformer_encoder_layer.1} parent=1 // pred_check
      _
    $region43: #{transformer_encoder_layer.1} parent=1 // pred_check_branch
      %93 = sbr.rel (0) target = $region45
    $region44: #{transformer_encoder_layer.1} parent=1 // pred_region
      _
    $region45: #{transformer_encoder_layer.1} parent=1 // pred_fallthru
      _
    // Predicated region
    $region46: #{transformer_encoder_layer.1} parent=1 // pred_check
      _
    $region47: #{transformer_encoder_layer.1} parent=1 // pred_check_branch
      %95 = sbr.rel (0) target = $region49
    $region48: #{transformer_encoder_layer.1} parent=1 // pred_region
      _
    $region49: #{transformer_encoder_layer.1} parent=1 // pred_fallthru
      _
    // Predicated region
    $region50: #{transformer_encoder_layer.1} parent=1 // pred_check
      _
    $region51: #{transformer_encoder_layer.1} parent=1 // pred_check_branch
      %97 = sbr.rel (0) target = $region53
    $region52: #{transformer_encoder_layer.1} parent=1 // pred_region
      _
    $region53: #{transformer_encoder_layer.1} parent=1 // pred_fallthru
      _
    // Predicated region
    $region54: #{transformer_encoder_layer.1} parent=1 // pred_check
      _
    $region55: #{transformer_encoder_layer.1} parent=1 // pred_check_branch
      %99 = sbr.rel (0) target = $region57
    $region56: #{transformer_encoder_layer.1} parent=1 // pred_region
      %100 = dma.done [#allocation3], 256
    $region57: #{transformer_encoder_layer.1} parent=1 // pred_fallthru
      _
    // Predicated region
    $region58: #{transformer_encoder_layer.1} parent=1 // pred_check
      _
    $region59: #{transformer_encoder_layer.1} parent=1 // pred_check_branch
      %102 = sbr.rel (0) target = $region61
    $region60: #{transformer_encoder_layer.1} parent=1 // pred_region
      %103 = dma.done [#allocation6], 3072
    $region61: #{transformer_encoder_layer.1} parent=1 // pred_fallthru
      _
    // Predicated region
    $region62: #{transformer_encoder_layer.1} parent=1 // pred_check
      _
    $region63: #{transformer_encoder_layer.1} parent=1 // pred_check_branch
      %105 = sbr.rel (0) target = $region65
    $region64: #{transformer_encoder_layer.1} parent=1 // pred_region
      %106 = dma.done [#allocation6], 1024
    $region65: #{transformer_encoder_layer.1} parent=1 // pred_fallthru
      _
    // Predicated region
    $region66: #{transformer_encoder_layer.1} parent=1 // pred_check
      _
    $region67: #{transformer_encoder_layer.1} parent=1 // pred_check_branch
      %108 = sbr.rel (0) target = $region69
    $region68: #{transformer_encoder_layer.1} parent=1 // pred_region
      %109 = dma.done [#allocation9], 2048
    $region69: #{transformer_encoder_layer.1} parent=1 // pred_fallthru
      _
    // Predicated region
    $region70: #{transformer_encoder_layer.1} parent=1 // pred_check
      _
    $region71: #{transformer_encoder_layer.1} parent=1 // pred_check_branch
      %111 = sbr.rel (0) target = $region73
    $region72: #{transformer_encoder_layer.1} parent=1 // pred_region
      %112 = dma.done [#allocation9], 2048
    $region73: #{transformer_encoder_layer.1} parent=1 // pred_fallthru
      _
    %v114 = vld [vmem:[#allocation2] sm:$0xff]
    %v115 = vld [vmem:[#allocation2 + $0x8] sm:$0xff]
    %v116 = vpack.c.bf16 %v115, %v114
    %v117 = vld [vmem:[#allocation5] sm:$0xff]
    %v118 = vld [vmem:[#allocation5 + $0x8] sm:$0xf]
    %v119 = vld [vmem:[#allocation5 + $0xc] sm:$0xff]
    %v120 = vld [vmem:[#allocation5 + $0x14] sm:$0xf]
    %v121 = vld [vmem:[#allocation5 + $0x18] sm:$0xff]
    %v122 = vld [vmem:[#allocation5 + $0x20] sm:$0xf]
    %v123 = vld [vmem:[#allocation5 + $0x24] sm:$0xff]
    %v124 = vld [vmem:[#allocation5 + $0x2c] sm:$0xf]
    %v125 = vld [vmem:[#allocation5 + $0x30] sm:$0xff]
    %v126 = vld [vmem:[#allocation5 + $0x38] sm:$0xf]
    %v127 = vld [vmem:[#allocation5 + $0x3c] sm:$0xff]
    %v128 = vld [vmem:[#allocation5 + $0x44] sm:$0xf]
    %v129 = vld [vmem:[#allocation5 + $0x48] sm:$0xff]
    %v130 = vld [vmem:[#allocation5 + $0x50] sm:$0xf]
    %v131 = vld [vmem:[#allocation5 + $0x54] sm:$0xff]
    %v132 = vld [vmem:[#allocation5 + $0x5c] sm:$0xf]
    %v133 = vld [vmem:[#allocation5 + $0x60] sm:$0xff]
    %v134 = vld [vmem:[#allocation5 + $0x68] sm:$0xf]
    %v135 = vld [vmem:[#allocation5 + $0x6c] sm:$0xff]
    %v136 = vld [vmem:[#allocation5 + $0x74] sm:$0xf]
    %v137 = vld [vmem:[#allocation5 + $0x78] sm:$0xff]
    %v138 = vld [vmem:[#allocation5 + $0x80] sm:$0xf]
    %v139 = vld [vmem:[#allocation5 + $0x84] sm:$0xff]
    %v140 = vld [vmem:[#allocation5 + $0x8c] sm:$0xf]
    %v141 = vld [vmem:[#allocation5 + $0x90] sm:$0xff]
    %v142 = vld [vmem:[#allocation5 + $0x98] sm:$0xf]
    %v143 = vld [vmem:[#allocation5 + $0x9c] sm:$0xff]
    %v144 = vld [vmem:[#allocation5 + $0xa4] sm:$0xf]
    %v145 = vld [vmem:[#allocation5 + $0xa8] sm:$0xff]
    %v146 = vld [vmem:[#allocation5 + $0xb0] sm:$0xf]
    %v147 = vld [vmem:[#allocation5 + $0xb4] sm:$0xff]
    %v148 = vld [vmem:[#allocation5 + $0xbc] sm:$0xf]
    %v149 = vld [vmem:[%s2] sm:$0x7]
    %v151 = vlaneseq
    %v152 = vshrl.u32 %v151, 7
    %v153 = vsub.s32 0, %v152
    %v154 = vrot.slane %v149, %v153
    %v155 = vlaneseq
    %v156 = vshrl.u32 %v155, 7
    %v157 = vsub.s32 1, %v156
    %v158 = vrot.slane %v149, %v157
    %v159 = vlaneseq
    %v160 = vshrl.u32 %v159, 7
    %v161 = vsub.s32 2, %v160
    %v162 = vrot.slane %v149, %v161
    %v198 = vunpack.c.l.b16 %v117
    %v199 = vunpack.c.h.b16 %v117
    %v200 = vunpack.c.l.b16 %v118
    %v201 = vunpack.c.l.b16 %v119
    %v202 = vunpack.c.h.b16 %v119
    %v203 = vunpack.c.l.b16 %v120
    %v204 = vunpack.c.l.b16 %v121
    %v205 = vunpack.c.h.b16 %v121
    %v206 = vunpack.c.l.b16 %v122
    %v207 = vunpack.c.l.b16 %v123
    %v208 = vunpack.c.h.b16 %v123
    %v209 = vunpack.c.l.b16 %v124
    %v210 = vunpack.c.l.b16 %v125
    %v211 = vunpack.c.h.b16 %v125
    %v212 = vunpack.c.l.b16 %v126
    %v213 = vunpack.c.l.b16 %v127
    %v214 = vunpack.c.h.b16 %v127
    %v215 = vunpack.c.l.b16 %v128
    %v216 = vunpack.c.l.b16 %v129
    %v217 = vunpack.c.h.b16 %v129
    %v218 = vunpack.c.l.b16 %v130
    %v219 = vunpack.c.l.b16 %v131
    %v220 = vunpack.c.h.b16 %v131
    %v221 = vunpack.c.l.b16 %v132
    %v222 = vunpack.c.l.b16 %v133
    %v223 = vunpack.c.h.b16 %v133
    %v224 = vunpack.c.l.b16 %v134
    %v225 = vunpack.c.l.b16 %v135
    %v226 = vunpack.c.h.b16 %v135
    %v227 = vunpack.c.l.b16 %v136
    %v228 = vunpack.c.l.b16 %v137
    %v229 = vunpack.c.h.b16 %v137
    %v230 = vunpack.c.l.b16 %v138
    %v231 = vunpack.c.l.b16 %v139
    %v232 = vunpack.c.h.b16 %v139
    %v233 = vunpack.c.l.b16 %v140
    %v234 = vunpack.c.l.b16 %v141
    %v235 = vunpack.c.h.b16 %v141
    %v236 = vunpack.c.l.b16 %v142
    %v237 = vunpack.c.l.b16 %v143
    %v238 = vunpack.c.h.b16 %v143
    %v239 = vunpack.c.l.b16 %v144
    %v240 = vunpack.c.l.b16 %v145
    %v241 = vunpack.c.h.b16 %v145
    %v242 = vunpack.c.l.b16 %v146
    %v243 = vunpack.c.l.b16 %v147
    %v244 = vunpack.c.h.b16 %v147
    %v245 = vunpack.c.l.b16 %v148
    %v246 = vpack.c.b16 %v201, %v198
    %v247 = vpack.c.b16 %v202, %v199
    %v248 = vpack.c.b16 %v203, %v200
    %v249 = vpack.c.b16 %v207, %v204
    %v250 = vpack.c.b16 %v208, %v205
    %v251 = vpack.c.b16 %v209, %v206
    %v252 = vpack.c.b16 %v213, %v210
    %v253 = vpack.c.b16 %v214, %v211
    %v254 = vpack.c.b16 %v215, %v212
    %v255 = vpack.c.b16 %v219, %v216
    %v256 = vpack.c.b16 %v220, %v217
    %v257 = vpack.c.b16 %v221, %v218
    %v258 = vpack.c.b16 %v225, %v222
    %v259 = vpack.c.b16 %v226, %v223
    %v260 = vpack.c.b16 %v227, %v224
    %v261 = vpack.c.b16 %v231, %v228
    %v262 = vpack.c.b16 %v232, %v229
    %v263 = vpack.c.b16 %v233, %v230
    %v264 = vpack.c.b16 %v237, %v234
    %v265 = vpack.c.b16 %v238, %v235
    %v266 = vpack.c.b16 %v239, %v236
    %v267 = vpack.c.b16 %v243, %v240
    %v268 = vpack.c.b16 %v244, %v241
    %v269 = vpack.c.b16 %v245, %v242
    %294 = vmatprep.subr.bf16.mxu0 %v247
    %295 = vmatpush1.bf16.msra.mxu0 %v246
    %296 = vmatprep.subr.bf16.mxu0 %v250
    %297 = vmatpush1.bf16.msra.mxu0 %v249
    %298 = vmatprep.subr.bf16.mxu0 %v253
    %299 = vmatpush1.bf16.msra.mxu0 %v252
    %300 = vmatprep.subr.bf16.mxu0 %v256
    %301 = vmatpush1.bf16.msra.mxu0 %v255
    %302 = vmatprep.subr.bf16.mxu0 %v259
    %303 = vmatpush1.bf16.msra.mxu0 %v258
    %304 = vmatprep.subr.bf16.mxu0 %v262
    %305 = vmatpush1.bf16.msra.mxu0 %v261
    %306 = vmatprep.subr.bf16.mxu0 %v265
    %307 = vmatpush1.bf16.msra.mxu0 %v264
    %308 = vmatprep.subr.bf16.mxu0 %v268
    %309 = vmatpush1.bf16.msra.mxu0 %v267
    %310 = vmatprep.subr.bf16.mxu0 0
    %311 = vmatpush1.bf16.msra.mxu0 0
    %312 = vmatprep.subr.bf16.mxu0 0
    %313 = vmatpush1.bf16.msra.mxu0 0
    %314 = vmatprep.subr.bf16.mxu0 0
    %315 = vmatpush1.bf16.msra.mxu0 0
    %316 = vmatprep.subr.bf16.mxu0 0
    %317 = vmatpush1.bf16.msra.mxu0 0
    %318 = vmatprep.subr.bf16.mxu0 0
    %319 = vmatpush1.bf16.msra.mxu0 0
    %320 = vmatprep.subr.bf16.mxu0 0
    %321 = vmatpush1.bf16.msra.mxu0 0
    %322 = vmatprep.subr.bf16.mxu0 0
    %323 = vmatpush1.bf16.msra.mxu0 0
    %324 = vmatprep.subr.bf16.mxu0 0
    %325 = vmatpush1.bf16.msra.mxu0 0
    %326 = vmatprep.mubr.bf16.mxu0 0
    %327 = vmatmul.mubr.bf16.gmra.mrb[0].mxu0 %v116
    %v328 = vpop.f32.mrb[0].mxu0
    %v329 = vadd.f32 %v154, %v328
    %v330 = vpop.f32.mrb[0].mxu0
    %v331 = vadd.f32 %v158, %v330
    %v332 = vpop.f32.mrb[0].mxu0
    %v333 = vadd.f32 %v154, %v332
    %v334 = vpop.f32.mrb[0].mxu0
    %v335 = vadd.f32 %v158, %v334
    %336 = vdwg.mxu0
    %337 = vmatprep.subr.bf16.mxu0 0
    %338 = vmatpush1.bf16.msra.mxu0 %v248
    %339 = vmatprep.subr.bf16.mxu0 0
    %340 = vmatpush1.bf16.msra.mxu0 %v251
    %341 = vmatprep.subr.bf16.mxu0 0
    %342 = vmatpush1.bf16.msra.mxu0 %v254
    %343 = vmatprep.subr.bf16.mxu0 0
    %344 = vmatpush1.bf16.msra.mxu0 %v257
    %345 = vmatprep.subr.bf16.mxu0 0
    %346 = vmatpush1.bf16.msra.mxu0 %v260
    %347 = vmatprep.subr.bf16.mxu0 0
    %348 = vmatpush1.bf16.msra.mxu0 %v263
    %349 = vmatprep.subr.bf16.mxu0 0
    %350 = vmatpush1.bf16.msra.mxu0 %v266
    %351 = vmatprep.subr.bf16.mxu0 0
    %352 = vmatpush1.bf16.msra.mxu0 %v269
    %353 = vmatprep.subr.bf16.mxu0 0
    %354 = vmatpush1.bf16.msra.mxu0 0
    %355 = vmatprep.subr.bf16.mxu0 0
    %356 = vmatpush1.bf16.msra.mxu0 0
    %357 = vmatprep.subr.bf16.mxu0 0
    %358 = vmatpush1.bf16.msra.mxu0 0
    %359 = vmatprep.subr.bf16.mxu0 0
    %360 = vmatpush1.bf16.msra.mxu0 0
    %361 = vmatprep.subr.bf16.mxu0 0
    %362 = vmatpush1.bf16.msra.mxu0 0
    %363 = vmatprep.subr.bf16.mxu0 0
    %364 = vmatpush1.bf16.msra.mxu0 0
    %365 = vmatprep.subr.bf16.mxu0 0
    %366 = vmatpush1.bf16.msra.mxu0 0
    %367 = vmatprep.subr.bf16.mxu0 0
    %368 = vmatpush1.bf16.msra.mxu0 0
    %369 = vmatprep.mubr.bf16.mxu0 0
    %370 = vmatmul.mubr.bf16.gmra.mrb[0].mxu0 %v116
    %v371 = vpop.f32.mrb[0].mxu0
    %v372 = vadd.f32 %v162, %v371
    %v373 = vpop.f32.mrb[0].mxu0
    %v374 = vpop.f32.mrb[0].mxu0
    %v375 = vadd.f32 %v162, %v374
    %v376 = vpop.f32.mrb[0].mxu0
    %377 = vdwg.mxu0
    %v378 = vpack.c.bf16 %v333, %v329
    %v379 = vpack.c.bf16 %v335, %v331
    %v380 = vpack.c.bf16 %v375, %v372
    %v381 = vlaneseq
    %v382 = vshrl.u32 %v381, 7
    %v383 = vadd.s32 %v382, 8
    %v384 = vlaneseq
    %v385 = vand.u32 %v384, 127
    %vm386 = vcmp.lt.s32.totalorder %v382, 0
    %v387 = vsub.s32 0, %v382
    %v388 = vsel %vm386, %v387, %v382
    %v389 = vshrl.u32 %v388, 1
    %v390 = vand.u32 %v388, 1
    %v391 = vsub.s32 0, %v390
    %v392 = vsel %vm386, %v391, %v390
    %vm393 = vcmp.lt.s32.totalorder %v383, 0
    %v394 = vsub.s32 0, %v383
    %v395 = vsel %vm393, %v394, %v383
    %v396 = vshrl.u32 %v395, 1
    %v397 = vand.u32 %v395, 1
    %v398 = vsub.s32 0, %v397
    %v399 = vsel %vm393, %v398, %v397
    %vm400 = vcmp.ne.s32.totalorder %v392, 0
    %vm401 = vcmp.ne.s32.totalorder %v399, 0
    %vm402 = vcmp.lt.s32.totalorder %v392, 0
    %vm403 = vcmp.lt.s32.totalorder %v399, 0
    %vm404 = vmand %vm402, %vm400
    %vm405 = vmand %vm403, %vm401
    %v406 = vadd.s32 %v392, 2
    %v407 = vadd.s32 %v399, 2
    %v408 = vsel %vm404, %v406, %v392
    %v409 = vsel %vm405, %v407, %v399
    %vm410 = vcmp.lt.s32.totalorder %v385, 0
    %v411 = vsub.s32 0, %v385
    %v412 = vsel %vm410, %v411, %v385
    %v413 = vshrl.u32 %v412, 1
    %v414 = vand.u32 %v412, 1
    %v415 = vsub.s32 0, %v414
    %v416 = vsel %vm410, %v415, %v414
    %vm417 = vcmp.ne.s32.totalorder %v416, 0
    %vm418 = vcmp.lt.s32.totalorder %v416, 0
    %vm419 = vmand %vm418, %vm417
    %v420 = vadd.s32 %v416, 2
    %v421 = vsel %vm419, %v420, %v416
    %vm422 = vcmp.eq.s32.totalorder %v408, %v421
    %vm423 = vcmp.eq.s32.totalorder %v409, %v421
    %vm424 = vcmask 261120
    %v426 = vsel %vm424, %v378, 0
    %v429 = vsel %vm424, %v379, 0
    %431 = vmatprep.subr.bf16.mxu0 0
    %432 = vmatpush1.bf16.xpose.msra.mxu0 %v429
    %433 = vmatprep.subr.bf16.mxu0 0
    %434 = vmatpush1.bf16.xpose.msra.mxu0 0
    %435 = vmatprep.subr.bf16.mxu0 0
    %436 = vmatpush1.bf16.xpose.msra.mxu0 0
    %437 = vmatprep.subr.bf16.mxu0 0
    %438 = vmatpush1.bf16.xpose.msra.mxu0 0
    %439 = vmatprep.subr.bf16.mxu0 0
    %440 = vmatpush1.bf16.xpose.msra.mxu0 0
    %441 = vmatprep.subr.bf16.mxu0 0
    %442 = vmatpush1.bf16.xpose.msra.mxu0 0
    %443 = vmatprep.subr.bf16.mxu0 0
    %444 = vmatpush1.bf16.xpose.msra.mxu0 0
    %445 = vmatprep.subr.bf16.mxu0 0
    %446 = vmatpush1.bf16.xpose.msra.mxu0 0
    %447 = vmatprep.subr.bf16.mxu0 0
    %448 = vmatpush1.bf16.xpose.msra.mxu0 0
    %449 = vmatprep.subr.bf16.mxu0 0
    %450 = vmatpush1.bf16.xpose.msra.mxu0 0
    %451 = vmatprep.subr.bf16.mxu0 0
    %452 = vmatpush1.bf16.xpose.msra.mxu0 0
    %453 = vmatprep.subr.bf16.mxu0 0
    %454 = vmatpush1.bf16.xpose.msra.mxu0 0
    %455 = vmatprep.subr.bf16.mxu0 0
    %456 = vmatpush1.bf16.xpose.msra.mxu0 0
    %457 = vmatprep.subr.bf16.mxu0 0
    %458 = vmatpush1.bf16.xpose.msra.mxu0 0
    %459 = vmatprep.subr.bf16.mxu0 0
    %460 = vmatpush1.bf16.xpose.msra.mxu0 0
    %461 = vmatprep.subr.bf16.mxu0 0
    %462 = vmatpush1.bf16.xpose.msra.mxu0 0
    %463 = vmatprep.mubr.bf16.mxu0 0
    %464 = vmatmul.mubr.bf16.gmra.mrb[0].mxu0 %v426
    %v465 = vpop.f32.mrb[0].mxu0
    %v466 = vadd.f32 0.0, %v465
    %v467 = vpop.f32.mrb[0].mxu0
    %v468 = vpop.f32.mrb[0].mxu0
    %v469 = vadd.f32 0.0, %v468
    %v470 = vpop.f32.mrb[0].mxu0
    %471 = vdwg.mxu0
    %v472 = vsel %vm422, %v466, -1e+30
    %v473 = vsel %vm423, %v469, -1e+30
    %vm474 = vcmask 130048
    %v475 = vsel %vm474, %v472, -inf
    %476 = vmax.xlane.f32.xlu0 %v475
    %v477 = vpop.xlane.xlu0 %476
    %v478 = vsel %vm474, %v473, -inf
    %479 = vmax.xlane.f32.xlu0 %v478
    %v480 = vpop.xlane.xlu0 %479
    %v481 = vsub.f32 %v472, %v477
    %v482 = vsub.f32 %v473, %v480
    %v483 = vmul.f32 %v481, 1.442695
    %v484 = vpow.pop %v483
    %v485 = vmul.f32 %v482, 1.442695
    %v486 = vpow.pop %v485
    %v487 = vsel %vm474, %v484, 0.0
    %488 = vadd.xlane.f32.xlu0 %v487
    %v489 = vpop.xlane.xlu0 %488
    %v490 = vsel %vm474, %v486, 0.0
    %491 = vadd.xlane.f32.xlu0 %v490
    %v492 = vpop.xlane.xlu0 %491
    %v493 = vrcp.pop %v489
    %v494 = vrcp.pop %v492
    %v495 = vmul.f32 %v484, %v493
    %v496 = vmul.f32 %v486, %v494
    %v497 = vpack.c.bf16 %v496, %v495
    %v499 = vsel %vm474, %v497, 0
    %501 = vmatprep.subr.bf16.mxu0 0
    %502 = vmatpush1.bf16.msra.mxu0 %v380
    %503 = vmatprep.subr.bf16.mxu0 0
    %504 = vmatpush1.bf16.msra.mxu0 0
    %505 = vmatprep.subr.bf16.mxu0 0
    %506 = vmatpush1.bf16.msra.mxu0 0
    %507 = vmatprep.subr.bf16.mxu0 0
    %508 = vmatpush1.bf16.msra.mxu0 0
    %509 = vmatprep.subr.bf16.mxu0 0
    %510 = vmatpush1.bf16.msra.mxu0 0
    %511 = vmatprep.subr.bf16.mxu0 0
    %512 = vmatpush1.bf16.msra.mxu0 0
    %513 = vmatprep.subr.bf16.mxu0 0
    %514 = vmatpush1.bf16.msra.mxu0 0
    %515 = vmatprep.subr.bf16.mxu0 0
    %516 = vmatpush1.bf16.msra.mxu0 0
    %517 = vmatprep.subr.bf16.mxu0 0
    %518 = vmatpush1.bf16.msra.mxu0 0
    %519 = vmatprep.subr.bf16.mxu0 0
    %520 = vmatpush1.bf16.msra.mxu0 0
    %521 = vmatprep.subr.bf16.mxu0 0
    %522 = vmatpush1.bf16.msra.mxu0 0
    %523 = vmatprep.subr.bf16.mxu0 0
    %524 = vmatpush1.bf16.msra.mxu0 0
    %525 = vmatprep.subr.bf16.mxu0 0
    %526 = vmatpush1.bf16.msra.mxu0 0
    %527 = vmatprep.subr.bf16.mxu0 0
    %528 = vmatpush1.bf16.msra.mxu0 0
    %529 = vmatprep.subr.bf16.mxu0 0
    %530 = vmatpush1.bf16.msra.mxu0 0
    %531 = vmatprep.subr.bf16.mxu0 0
    %532 = vmatpush1.bf16.msra.mxu0 0
    %533 = vmatprep.mubr.bf16.mxu0 0
    %534 = vmatmul.mubr.bf16.gmra.mrb[0].mxu0 %v499
    %v535 = vpop.f32.mrb[0].mxu0
    %v536 = vadd.f32 0.0, %v535
    %v537 = vpop.f32.mrb[0].mxu0
    %v538 = vpop.f32.mrb[0].mxu0
    %v539 = vadd.f32 0.0, %v538
    %v540 = vpop.f32.mrb[0].mxu0
    %541 = vdwg.mxu0
    %543 = vrot.lane.b32.xlu0 %v378, 96
    %v544 = vpop.permute.xlu0 %543
    %546 = vrot.lane.b32.xlu0 %v379, 96
    %v547 = vpop.permute.xlu0 %546
    %v549 = vsel %vm424, %v544, 0
    %v552 = vsel %vm424, %v547, 0
    %554 = vmatprep.subr.bf16.mxu0 0
    %555 = vmatpush1.bf16.xpose.msra.mxu0 %v552
    %556 = vmatprep.subr.bf16.mxu0 0
    %557 = vmatpush1.bf16.xpose.msra.mxu0 0
    %558 = vmatprep.subr.bf16.mxu0 0
    %559 = vmatpush1.bf16.xpose.msra.mxu0 0
    %560 = vmatprep.subr.bf16.mxu0 0
    %561 = vmatpush1.bf16.xpose.msra.mxu0 0
    %562 = vmatprep.subr.bf16.mxu0 0
    %563 = vmatpush1.bf16.xpose.msra.mxu0 0
    %564 = vmatprep.subr.bf16.mxu0 0
    %565 = vmatpush1.bf16.xpose.msra.mxu0 0
    %566 = vmatprep.subr.bf16.mxu0 0
    %567 = vmatpush1.bf16.xpose.msra.mxu0 0
    %568 = vmatprep.subr.bf16.mxu0 0
    %569 = vmatpush1.bf16.xpose.msra.mxu0 0
    %570 = vmatprep.subr.bf16.mxu0 0
    %571 = vmatpush1.bf16.xpose.msra.mxu0 0
    %572 = vmatprep.subr.bf16.mxu0 0
    %573 = vmatpush1.bf16.xpose.msra.mxu0 0
    %574 = vmatprep.subr.bf16.mxu0 0
    %575 = vmatpush1.bf16.xpose.msra.mxu0 0
    %576 = vmatprep.subr.bf16.mxu0 0
    %577 = vmatpush1.bf16.xpose.msra.mxu0 0
    %578 = vmatprep.subr.bf16.mxu0 0
    %579 = vmatpush1.bf16.xpose.msra.mxu0 0
    %580 = vmatprep.subr.bf16.mxu0 0
    %581 = vmatpush1.bf16.xpose.msra.mxu0 0
    %582 = vmatprep.subr.bf16.mxu0 0
    %583 = vmatpush1.bf16.xpose.msra.mxu0 0
    %584 = vmatprep.subr.bf16.mxu0 0
    %585 = vmatpush1.bf16.xpose.msra.mxu0 0
    %586 = vmatprep.mubr.bf16.mxu0 0
    %587 = vmatmul.mubr.bf16.gmra.mrb[0].mxu0 %v549
    %v588 = vpop.f32.mrb[0].mxu0
    %v589 = vadd.f32 0.0, %v588
    %v590 = vpop.f32.mrb[0].mxu0
    %v591 = vpop.f32.mrb[0].mxu0
    %v592 = vadd.f32 0.0, %v591
    %v593 = vpop.f32.mrb[0].mxu0
    %594 = vdwg.mxu0
    %v595 = vsel %vm422, %v589, -1e+30
    %v596 = vsel %vm423, %v592, -1e+30
    %v597 = vsel %vm474, %v595, -inf
    %598 = vmax.xlane.f32.xlu0 %v597
    %v599 = vpop.xlane.xlu0 %598
    %v600 = vsel %vm474, %v596, -inf
    %601 = vmax.xlane.f32.xlu0 %v600
    %v602 = vpop.xlane.xlu0 %601
    %v603 = vsub.f32 %v595, %v599
    %v604 = vsub.f32 %v596, %v602
    %v605 = vmul.f32 %v603, 1.442695
    %v606 = vpow.pop %v605
    %v607 = vmul.f32 %v604, 1.442695
    %v608 = vpow.pop %v607
    %v609 = vsel %vm474, %v606, 0.0
    %610 = vadd.xlane.f32.xlu0 %v609
    %v611 = vpop.xlane.xlu0 %610
    %v612 = vsel %vm474, %v608, 0.0
    %613 = vadd.xlane.f32.xlu0 %v612
    %v614 = vpop.xlane.xlu0 %613
    %v615 = vrcp.pop %v611
    %v616 = vrcp.pop %v614
    %v617 = vmul.f32 %v606, %v615
    %v618 = vmul.f32 %v608, %v616
    %v619 = vpack.c.bf16 %v618, %v617
    %621 = vrot.lane.b32.xlu0 %v380, 96
    %v622 = vpop.permute.xlu0 %621
    %v625 = vsel %vm474, %v619, 0
    %627 = vmatprep.subr.bf16.mxu0 0
    %628 = vmatpush1.bf16.msra.mxu0 %v622
    %629 = vmatprep.subr.bf16.mxu0 0
    %630 = vmatpush1.bf16.msra.mxu0 0
    %631 = vmatprep.subr.bf16.mxu0 0
    %632 = vmatpush1.bf16.msra.mxu0 0
    %633 = vmatprep.subr.bf16.mxu0 0
    %634 = vmatpush1.bf16.msra.mxu0 0
    %635 = vmatprep.subr.bf16.mxu0 0
    %636 = vmatpush1.bf16.msra.mxu0 0
    %637 = vmatprep.subr.bf16.mxu0 0
    %638 = vmatpush1.bf16.msra.mxu0 0
    %639 = vmatprep.subr.bf16.mxu0 0
    %640 = vmatpush1.bf16.msra.mxu0 0
    %641 = vmatprep.subr.bf16.mxu0 0
    %642 = vmatpush1.bf16.msra.mxu0 0
    %643 = vmatprep.subr.bf16.mxu0 0
    %644 = vmatpush1.bf16.msra.mxu0 0
    %645 = vmatprep.subr.bf16.mxu0 0
    %646 = vmatpush1.bf16.msra.mxu0 0
    %647 = vmatprep.subr.bf16.mxu0 0
    %648 = vmatpush1.bf16.msra.mxu0 0
    %649 = vmatprep.subr.bf16.mxu0 0
    %650 = vmatpush1.bf16.msra.mxu0 0
    %651 = vmatprep.subr.bf16.mxu0 0
    %652 = vmatpush1.bf16.msra.mxu0 0
    %653 = vmatprep.subr.bf16.mxu0 0
    %654 = vmatpush1.bf16.msra.mxu0 0
    %655 = vmatprep.subr.bf16.mxu0 0
    %656 = vmatpush1.bf16.msra.mxu0 0
    %657 = vmatprep.subr.bf16.mxu0 0
    %658 = vmatpush1.bf16.msra.mxu0 0
    %659 = vmatprep.mubr.bf16.mxu0 0
    %660 = vmatmul.mubr.bf16.gmra.mrb[0].mxu0 %v625
    %v661 = vpop.f32.mrb[0].mxu0
    %v662 = vadd.f32 0.0, %v661
    %v663 = vpop.f32.mrb[0].mxu0
    %v664 = vpop.f32.mrb[0].mxu0
    %v665 = vadd.f32 0.0, %v664
    %v666 = vpop.f32.mrb[0].mxu0
    %667 = vdwg.mxu0
    %668 = vrot.lane.b32.xlu0 %v378, 64
    %v669 = vpop.permute.xlu0 %668
    %670 = vrot.lane.b32.xlu0 %v379, 64
    %v671 = vpop.permute.xlu0 %670
    %v673 = vsel %vm424, %v669, 0
    %v676 = vsel %vm424, %v671, 0
    %678 = vmatprep.subr.bf16.mxu0 0
    %679 = vmatpush1.bf16.xpose.msra.mxu0 %v676
    %680 = vmatprep.subr.bf16.mxu0 0
    %681 = vmatpush1.bf16.xpose.msra.mxu0 0
    %682 = vmatprep.subr.bf16.mxu0 0
    %683 = vmatpush1.bf16.xpose.msra.mxu0 0
    %684 = vmatprep.subr.bf16.mxu0 0
    %685 = vmatpush1.bf16.xpose.msra.mxu0 0
    %686 = vmatprep.subr.bf16.mxu0 0
    %687 = vmatpush1.bf16.xpose.msra.mxu0 0
    %688 = vmatprep.subr.bf16.mxu0 0
    %689 = vmatpush1.bf16.xpose.msra.mxu0 0
    %690 = vmatprep.subr.bf16.mxu0 0
    %691 = vmatpush1.bf16.xpose.msra.mxu0 0
    %692 = vmatprep.subr.bf16.mxu0 0
    %693 = vmatpush1.bf16.xpose.msra.mxu0 0
    %694 = vmatprep.subr.bf16.mxu0 0
    %695 = vmatpush1.bf16.xpose.msra.mxu0 0
    %696 = vmatprep.subr.bf16.mxu0 0
    %697 = vmatpush1.bf16.xpose.msra.mxu0 0
    %698 = vmatprep.subr.bf16.mxu0 0
    %699 = vmatpush1.bf16.xpose.msra.mxu0 0
    %700 = vmatprep.subr.bf16.mxu0 0
    %701 = vmatpush1.bf16.xpose.msra.mxu0 0
    %702 = vmatprep.subr.bf16.mxu0 0
    %703 = vmatpush1.bf16.xpose.msra.mxu0 0
    %704 = vmatprep.subr.bf16.mxu0 0
    %705 = vmatpush1.bf16.xpose.msra.mxu0 0
    %706 = vmatprep.subr.bf16.mxu0 0
    %707 = vmatpush1.bf16.xpose.msra.mxu0 0
    %708 = vmatprep.subr.bf16.mxu0 0
    %709 = vmatpush1.bf16.xpose.msra.mxu0 0
    %710 = vmatprep.mubr.bf16.mxu0 0
    %711 = vmatmul.mubr.bf16.gmra.mrb[0].mxu0 %v673
    %v712 = vpop.f32.mrb[0].mxu0
    %v713 = vadd.f32 0.0, %v712
    %v714 = vpop.f32.mrb[0].mxu0
    %v715 = vpop.f32.mrb[0].mxu0
    %v716 = vadd.f32 0.0, %v715
    %v717 = vpop.f32.mrb[0].mxu0
    %718 = vdwg.mxu0
    %v719 = vsel %vm422, %v713, -1e+30
    %v720 = vsel %vm423, %v716, -1e+30
    %v721 = vsel %vm474, %v719, -inf
    %722 = vmax.xlane.f32.xlu0 %v721
    %v723 = vpop.xlane.xlu0 %722
    %v724 = vsel %vm474, %v720, -inf
    %725 = vmax.xlane.f32.xlu0 %v724
    %v726 = vpop.xlane.xlu0 %725
    %v727 = vsub.f32 %v719, %v723
    %v728 = vsub.f32 %v720, %v726
    %v729 = vmul.f32 %v727, 1.442695
    %v730 = vpow.pop %v729
    %v731 = vmul.f32 %v728, 1.442695
    %v732 = vpow.pop %v731
    %v733 = vsel %vm474, %v730, 0.0
    %734 = vadd.xlane.f32.xlu0 %v733
    %v735 = vpop.xlane.xlu0 %734
    %v736 = vsel %vm474, %v732, 0.0
    %737 = vadd.xlane.f32.xlu0 %v736
    %v738 = vpop.xlane.xlu0 %737
    %v739 = vrcp.pop %v735
    %v740 = vrcp.pop %v738
    %v741 = vmul.f32 %v730, %v739
    %v742 = vmul.f32 %v732, %v740
    %v743 = vpack.c.bf16 %v742, %v741
    %744 = vrot.lane.b32.xlu0 %v380, 64
    %v745 = vpop.permute.xlu0 %744
    %v748 = vsel %vm474, %v743, 0
    %750 = vmatprep.subr.bf16.mxu0 0
    %751 = vmatpush1.bf16.msra.mxu0 %v745
    %752 = vmatprep.subr.bf16.mxu0 0
    %753 = vmatpush1.bf16.msra.mxu0 0
    %754 = vmatprep.subr.bf16.mxu0 0
    %755 = vmatpush1.bf16.msra.mxu0 0
    %756 = vmatprep.subr.bf16.mxu0 0
    %757 = vmatpush1.bf16.msra.mxu0 0
    %758 = vmatprep.subr.bf16.mxu0 0
    %759 = vmatpush1.bf16.msra.mxu0 0
    %760 = vmatprep.subr.bf16.mxu0 0
    %761 = vmatpush1.bf16.msra.mxu0 0
    %762 = vmatprep.subr.bf16.mxu0 0
    %763 = vmatpush1.bf16.msra.mxu0 0
    %764 = vmatprep.subr.bf16.mxu0 0
    %765 = vmatpush1.bf16.msra.mxu0 0
    %766 = vmatprep.subr.bf16.mxu0 0
    %767 = vmatpush1.bf16.msra.mxu0 0
    %768 = vmatprep.subr.bf16.mxu0 0
    %769 = vmatpush1.bf16.msra.mxu0 0
    %770 = vmatprep.subr.bf16.mxu0 0
    %771 = vmatpush1.bf16.msra.mxu0 0
    %772 = vmatprep.subr.bf16.mxu0 0
    %773 = vmatpush1.bf16.msra.mxu0 0
    %774 = vmatprep.subr.bf16.mxu0 0
    %775 = vmatpush1.bf16.msra.mxu0 0
    %776 = vmatprep.subr.bf16.mxu0 0
    %777 = vmatpush1.bf16.msra.mxu0 0
    %778 = vmatprep.subr.bf16.mxu0 0
    %779 = vmatpush1.bf16.msra.mxu0 0
    %780 = vmatprep.subr.bf16.mxu0 0
    %781 = vmatpush1.bf16.msra.mxu0 0
    %782 = vmatprep.mubr.bf16.mxu0 0
    %783 = vmatmul.mubr.bf16.gmra.mrb[0].mxu0 %v748
    %v784 = vpop.f32.mrb[0].mxu0
    %v785 = vadd.f32 0.0, %v784
    %v786 = vpop.f32.mrb[0].mxu0
    %v787 = vpop.f32.mrb[0].mxu0
    %v788 = vadd.f32 0.0, %v787
    %v789 = vpop.f32.mrb[0].mxu0
    %790 = vdwg.mxu0
    %791 = vrot.lane.b32.xlu0 %v378, 32
    %v792 = vpop.permute.xlu0 %791
    %793 = vrot.lane.b32.xlu0 %v379, 32
    %v794 = vpop.permute.xlu0 %793
    %v796 = vsel %vm424, %v792, 0
    %v799 = vsel %vm424, %v794, 0
    %801 = vmatprep.subr.bf16.mxu0 0
    %802 = vmatpush1.bf16.xpose.msra.mxu0 %v799
    %803 = vmatprep.subr.bf16.mxu0 0
    %804 = vmatpush1.bf16.xpose.msra.mxu0 0
    %805 = vmatprep.subr.bf16.mxu0 0
    %806 = vmatpush1.bf16.xpose.msra.mxu0 0
    %807 = vmatprep.subr.bf16.mxu0 0
    %808 = vmatpush1.bf16.xpose.msra.mxu0 0
    %809 = vmatprep.subr.bf16.mxu0 0
    %810 = vmatpush1.bf16.xpose.msra.mxu0 0
    %811 = vmatprep.subr.bf16.mxu0 0
    %812 = vmatpush1.bf16.xpose.msra.mxu0 0
    %813 = vmatprep.subr.bf16.mxu0 0
    %814 = vmatpush1.bf16.xpose.msra.mxu0 0
    %815 = vmatprep.subr.bf16.mxu0 0
    %816 = vmatpush1.bf16.xpose.msra.mxu0 0
    %817 = vmatprep.subr.bf16.mxu0 0
    %818 = vmatpush1.bf16.xpose.msra.mxu0 0
    %819 = vmatprep.subr.bf16.mxu0 0
    %820 = vmatpush1.bf16.xpose.msra.mxu0 0
    %821 = vmatprep.subr.bf16.mxu0 0
    %822 = vmatpush1.bf16.xpose.msra.mxu0 0
    %823 = vmatprep.subr.bf16.mxu0 0
    %824 = vmatpush1.bf16.xpose.msra.mxu0 0
    %825 = vmatprep.subr.bf16.mxu0 0
    %826 = vmatpush1.bf16.xpose.msra.mxu0 0
    %827 = vmatprep.subr.bf16.mxu0 0
    %828 = vmatpush1.bf16.xpose.msra.mxu0 0
    %829 = vmatprep.subr.bf16.mxu0 0
    %830 = vmatpush1.bf16.xpose.msra.mxu0 0
    %831 = vmatprep.subr.bf16.mxu0 0
    %832 = vmatpush1.bf16.xpose.msra.mxu0 0
    %833 = vmatprep.mubr.bf16.mxu0 0
    %834 = vmatmul.mubr.bf16.gmra.mrb[0].mxu0 %v796
    %v835 = vpop.f32.mrb[0].mxu0
    %v836 = vadd.f32 0.0, %v835
    %v837 = vpop.f32.mrb[0].mxu0
    %v838 = vpop.f32.mrb[0].mxu0
    %v839 = vadd.f32 0.0, %v838
    %v840 = vpop.f32.mrb[0].mxu0
    %841 = vdwg.mxu0
    %v842 = vsel %vm422, %v836, -1e+30
    %v843 = vsel %vm423, %v839, -1e+30
    %v844 = vsel %vm474, %v842, -inf
    %845 = vmax.xlane.f32.xlu0 %v844
    %v846 = vpop.xlane.xlu0 %845
    %v847 = vsel %vm474, %v843, -inf
    %848 = vmax.xlane.f32.xlu0 %v847
    %v849 = vpop.xlane.xlu0 %848
    %v850 = vsub.f32 %v842, %v846
    %v851 = vsub.f32 %v843, %v849
    %v852 = vmul.f32 %v850, 1.442695
    %v853 = vpow.pop %v852
    %v854 = vmul.f32 %v851, 1.442695
    %v855 = vpow.pop %v854
    %v856 = vsel %vm474, %v853, 0.0
    %857 = vadd.xlane.f32.xlu0 %v856
    %v858 = vpop.xlane.xlu0 %857
    %v859 = vsel %vm474, %v855, 0.0
    %860 = vadd.xlane.f32.xlu0 %v859
    %v861 = vpop.xlane.xlu0 %860
    %v862 = vrcp.pop %v858
    %v863 = vrcp.pop %v861
    %v864 = vmul.f32 %v853, %v862
    %v865 = vmul.f32 %v855, %v863
    %v866 = vpack.c.bf16 %v865, %v864
    %867 = vrot.lane.b32.xlu0 %v380, 32
    %v868 = vpop.permute.xlu0 %867
    %v871 = vsel %vm474, %v866, 0
    %873 = vmatprep.subr.bf16.mxu0 0
    %874 = vmatpush1.bf16.msra.mxu0 %v868
    %875 = vmatprep.subr.bf16.mxu0 0
    %876 = vmatpush1.bf16.msra.mxu0 0
    %877 = vmatprep.subr.bf16.mxu0 0
    %878 = vmatpush1.bf16.msra.mxu0 0
    %879 = vmatprep.subr.bf16.mxu0 0
    %880 = vmatpush1.bf16.msra.mxu0 0
    %881 = vmatprep.subr.bf16.mxu0 0
    %882 = vmatpush1.bf16.msra.mxu0 0
    %883 = vmatprep.subr.bf16.mxu0 0
    %884 = vmatpush1.bf16.msra.mxu0 0
    %885 = vmatprep.subr.bf16.mxu0 0
    %886 = vmatpush1.bf16.msra.mxu0 0
    %887 = vmatprep.subr.bf16.mxu0 0
    %888 = vmatpush1.bf16.msra.mxu0 0
    %889 = vmatprep.subr.bf16.mxu0 0
    %890 = vmatpush1.bf16.msra.mxu0 0
    %891 = vmatprep.subr.bf16.mxu0 0
    %892 = vmatpush1.bf16.msra.mxu0 0
    %893 = vmatprep.subr.bf16.mxu0 0
    %894 = vmatpush1.bf16.msra.mxu0 0
    %895 = vmatprep.subr.bf16.mxu0 0
    %896 = vmatpush1.bf16.msra.mxu0 0
    %897 = vmatprep.subr.bf16.mxu0 0
    %898 = vmatpush1.bf16.msra.mxu0 0
    %899 = vmatprep.subr.bf16.mxu0 0
    %900 = vmatpush1.bf16.msra.mxu0 0
    %901 = vmatprep.subr.bf16.mxu0 0
    %902 = vmatpush1.bf16.msra.mxu0 0
    %903 = vmatprep.subr.bf16.mxu0 0
    %904 = vmatpush1.bf16.msra.mxu0 0
    %905 = vmatprep.mubr.bf16.mxu0 0
    %906 = vmatmul.mubr.bf16.gmra.mrb[0].mxu0 %v871
    %v907 = vpop.f32.mrb[0].mxu0
    %v908 = vadd.f32 0.0, %v907
    %v909 = vpop.f32.mrb[0].mxu0
    %v910 = vpop.f32.mrb[0].mxu0
    %v911 = vadd.f32 0.0, %v910
    %v912 = vpop.f32.mrb[0].mxu0
    %913 = vdwg.mxu0
    %916 = vrot.lane.b32.xlu0 %v662, 32
    %v917 = vpop.permute.xlu0 %916
    %918 = vrot.lane.b32.xlu0 %v665, 32
    %v919 = vpop.permute.xlu0 %918
    %924 = vrot.lane.b32.xlu0 %v785, 64
    %v925 = vpop.permute.xlu0 %924
    %926 = vrot.lane.b32.xlu0 %v788, 64
    %v927 = vpop.permute.xlu0 %926
    %932 = vrot.lane.b32.xlu0 %v908, 96
    %v933 = vpop.permute.xlu0 %932
    %934 = vrot.lane.b32.xlu0 %v911, 96
    %v935 = vpop.permute.xlu0 %934
    %v938 = vsel %vm424, %v536, %v917
    %v939 = vsel %vm424, %v539, %v919
    %vm940 = vcmask 523264
    %v941 = vsel %vm940, %v938, %v925
    %v942 = vsel %vm940, %v939, %v927
    %vm943 = vcmask 785408
    %v944 = vsel %vm943, %v941, %v933
    %v945 = vsel %vm943, %v942, %v935
    %v946 = vpack.c.bf16 %v945, %v944
    %v947 = vld [vmem:[#allocation7] sm:$0xf]
    %v948 = vld [vmem:[#allocation7 + $0x4] sm:$0xf]
    %v949 = vld [vmem:[#allocation7 + $0x8] sm:$0xf]
    %v950 = vld [vmem:[#allocation7 + $0xc] sm:$0xf]
    %v951 = vld [vmem:[#allocation7 + $0x10] sm:$0xf]
    %v952 = vld [vmem:[#allocation7 + $0x14] sm:$0xf]
    %v953 = vld [vmem:[#allocation7 + $0x18] sm:$0xf]
    %v954 = vld [vmem:[#allocation7 + $0x1c] sm:$0xf]
    %v955 = vld [vmem:[#allocation7 + $0x20] sm:$0xf]
    %v956 = vld [vmem:[#allocation7 + $0x24] sm:$0xf]
    %v957 = vld [vmem:[#allocation7 + $0x28] sm:$0xf]
    %v958 = vld [vmem:[#allocation7 + $0x2c] sm:$0xf]
    %v959 = vld [vmem:[#allocation7 + $0x30] sm:$0xf]
    %v960 = vld [vmem:[#allocation7 + $0x34] sm:$0xf]
    %v961 = vld [vmem:[#allocation7 + $0x38] sm:$0xf]
    %v962 = vld [vmem:[#allocation7 + $0x3c] sm:$0xf]
    %v963 = vld [vmem:[%s4] sm:$0x1]
    %v965 = vlaneseq
    %v966 = vshrl.u32 %v965, 7
    %v967 = vsub.s32 0, %v966
    %v968 = vrot.slane %v963, %v967
    %v986 = vunpack.c.l.b16 %v947
    %v987 = vunpack.c.l.b16 %v948
    %v988 = vunpack.c.l.b16 %v949
    %v989 = vunpack.c.l.b16 %v950
    %v990 = vunpack.c.l.b16 %v951
    %v991 = vunpack.c.l.b16 %v952
    %v992 = vunpack.c.l.b16 %v953
    %v993 = vunpack.c.l.b16 %v954
    %v994 = vunpack.c.l.b16 %v955
    %v995 = vunpack.c.l.b16 %v956
    %v996 = vunpack.c.l.b16 %v957
    %v997 = vunpack.c.l.b16 %v958
    %v998 = vunpack.c.l.b16 %v959
    %v999 = vunpack.c.l.b16 %v960
    %v1000 = vunpack.c.l.b16 %v961
    %v1001 = vunpack.c.l.b16 %v962
    %v1002 = vpack.c.b16 %v987, %v986
    %v1003 = vpack.c.b16 %v989, %v988
    %v1004 = vpack.c.b16 %v991, %v990
    %v1005 = vpack.c.b16 %v993, %v992
    %v1006 = vpack.c.b16 %v995, %v994
    %v1007 = vpack.c.b16 %v997, %v996
    %v1008 = vpack.c.b16 %v999, %v998
    %v1009 = vpack.c.b16 %v1001, %v1000
    %1018 = vmatprep.subr.bf16.mxu0 0
    %1019 = vmatpush1.bf16.msra.mxu0 %v1002
    %1020 = vmatprep.subr.bf16.mxu0 0
    %1021 = vmatpush1.bf16.msra.mxu0 %v1003
    %1022 = vmatprep.subr.bf16.mxu0 0
    %1023 = vmatpush1.bf16.msra.mxu0 %v1004
    %1024 = vmatprep.subr.bf16.mxu0 0
    %1025 = vmatpush1.bf16.msra.mxu0 %v1005
    %1026 = vmatprep.subr.bf16.mxu0 0
    %1027 = vmatpush1.bf16.msra.mxu0 %v1006
    %1028 = vmatprep.subr.bf16.mxu0 0
    %1029 = vmatpush1.bf16.msra.mxu0 %v1007
    %1030 = vmatprep.subr.bf16.mxu0 0
    %1031 = vmatpush1.bf16.msra.mxu0 %v1008
    %1032 = vmatprep.subr.bf16.mxu0 0
    %1033 = vmatpush1.bf16.msra.mxu0 %v1009
    %1034 = vmatprep.subr.bf16.mxu0 0
    %1035 = vmatpush1.bf16.msra.mxu0 0
    %1036 = vmatprep.subr.bf16.mxu0 0
    %1037 = vmatpush1.bf16.msra.mxu0 0
    %1038 = vmatprep.subr.bf16.mxu0 0
    %1039 = vmatpush1.bf16.msra.mxu0 0
    %1040 = vmatprep.subr.bf16.mxu0 0
    %1041 = vmatpush1.bf16.msra.mxu0 0
    %1042 = vmatprep.subr.bf16.mxu0 0
    %1043 = vmatpush1.bf16.msra.mxu0 0
    %1044 = vmatprep.subr.bf16.mxu0 0
    %1045 = vmatpush1.bf16.msra.mxu0 0
    %1046 = vmatprep.subr.bf16.mxu0 0
    %1047 = vmatpush1.bf16.msra.mxu0 0
    %1048 = vmatprep.subr.bf16.mxu0 0
    %1049 = vmatpush1.bf16.msra.mxu0 0
    %1050 = vmatprep.mubr.bf16.mxu0 0
    %1051 = vmatmul.mubr.bf16.gmra.mrb[0].mxu0 %v946
    %v1052 = vpop.f32.mrb[0].mxu0
    %v1053 = vadd.f32 %v968, %v1052
    %v1054 = vpop.f32.mrb[0].mxu0
    %v1055 = vpop.f32.mrb[0].mxu0
    %v1056 = vadd.f32 %v968, %v1055
    %v1057 = vpop.f32.mrb[0].mxu0
    %1058 = vdwg.mxu0
    %v1059 = vadd.f32 %v114, %v1053
    %v1060 = vadd.f32 %v115, %v1056
    %v1061 = vld [vmem:[%s9] sm:$0x1]
    %v1062 = vld [vmem:[%s10] sm:$0x1]
    %1063 = vadd.xlane.f32.xlu0 %v1059
    %v1064 = vpop.xlane.xlu0 %1063
    %1065 = vadd.xlane.f32.xlu0 %v1060
    %v1066 = vpop.xlane.xlu0 %1065
    %v1067 = vrcp.pop 128.0
    %v1068 = vmul.f32 %v1064, %v1067
    %v1069 = vmul.f32 %v1066, %v1067
    %v1070 = vsub.f32 %v1059, %v1068
    %v1071 = vsub.f32 %v1060, %v1069
    %v1072 = vmul.f32 %v1070, %v1070
    %v1073 = vmul.f32 %v1071, %v1071
    %1074 = vadd.xlane.f32.xlu0 %v1072
    %v1075 = vpop.xlane.xlu0 %1074
    %1076 = vadd.xlane.f32.xlu0 %v1073
    %v1077 = vpop.xlane.xlu0 %1076
    %v1078 = vmul.f32 %v1075, %v1067
    %v1079 = vmul.f32 %v1077, %v1067
    %v1080 = vadd.f32 %v1078, 1e-05
    %v1081 = vadd.f32 %v1079, 1e-05
    %v1082 = vrsqrt.pop %v1080
    %v1083 = vrsqrt.pop %v1081
    %v1084 = vmul.f32 %v1070, %v1082
    %v1085 = vmul.f32 %v1071, %v1083
    %v1087 = vlaneseq
    %v1088 = vshrl.u32 %v1087, 7
    %v1089 = vsub.s32 0, %v1088
    %v1090 = vrot.slane %v1061, %v1089
    %v1092 = vmul.f32 %v1084, %v1090
    %v1093 = vmul.f32 %v1085, %v1090
    %v1095 = vlaneseq
    %v1096 = vshrl.u32 %v1095, 7
    %v1097 = vsub.s32 0, %v1096
    %v1098 = vrot.slane %v1062, %v1097
    %v1100 = vadd.f32 %v1092, %v1098
    %v1101 = vadd.f32 %v1093, %v1098
    %v1102 = vpack.c.bf16 %v1101, %v1100
    %v1103 = vld [vmem:[#allocation8] sm:$0xff]
    %v1104 = vld [vmem:[#allocation8 + $0x8] sm:$0xff]
    %v1105 = vld [vmem:[#allocation8 + $0x10] sm:$0xff]
    %v1106 = vld [vmem:[#allocation8 + $0x18] sm:$0xff]
    %v1107 = vld [vmem:[#allocation8 + $0x20] sm:$0xff]
    %v1108 = vld [vmem:[#allocation8 + $0x28] sm:$0xff]
    %v1109 = vld [vmem:[#allocation8 + $0x30] sm:$0xff]
    %v1110 = vld [vmem:[#allocation8 + $0x38] sm:$0xff]
    %v1111 = vld [vmem:[#allocation8 + $0x40] sm:$0xff]
    %v1112 = vld [vmem:[#allocation8 + $0x48] sm:$0xff]
    %v1113 = vld [vmem:[#allocation8 + $0x50] sm:$0xff]
    %v1114 = vld [vmem:[#allocation8 + $0x58] sm:$0xff]
    %v1115 = vld [vmem:[#allocation8 + $0x60] sm:$0xff]
    %v1116 = vld [vmem:[#allocation8 + $0x68] sm:$0xff]
    %v1117 = vld [vmem:[#allocation8 + $0x70] sm:$0xff]
    %v1118 = vld [vmem:[#allocation8 + $0x78] sm:$0xff]
    %v1119 = vld [vmem:[%s6] sm:$0x3]
    %v1121 = vlaneseq
    %v1122 = vshrl.u32 %v1121, 7
    %v1123 = vsub.s32 0, %v1122
    %v1124 = vrot.slane %v1119, %v1123
    %v1125 = vlaneseq
    %v1126 = vshrl.u32 %v1125, 7
    %v1127 = vsub.s32 1, %v1126
    %v1128 = vrot.slane %v1119, %v1127
    %v1147 = vunpack.c.l.b16 %v1103
    %v1148 = vunpack.c.h.b16 %v1103
    %v1149 = vunpack.c.l.b16 %v1104
    %v1150 = vunpack.c.h.b16 %v1104
    %v1151 = vunpack.c.l.b16 %v1105
    %v1152 = vunpack.c.h.b16 %v1105
    %v1153 = vunpack.c.l.b16 %v1106
    %v1154 = vunpack.c.h.b16 %v1106
    %v1155 = vunpack.c.l.b16 %v1107
    %v1156 = vunpack.c.h.b16 %v1107
    %v1157 = vunpack.c.l.b16 %v1108
    %v1158 = vunpack.c.h.b16 %v1108
    %v1159 = vunpack.c.l.b16 %v1109
    %v1160 = vunpack.c.h.b16 %v1109
    %v1161 = vunpack.c.l.b16 %v1110
    %v1162 = vunpack.c.h.b16 %v1110
    %v1163 = vunpack.c.l.b16 %v1111
    %v1164 = vunpack.c.h.b16 %v1111
    %v1165 = vunpack.c.l.b16 %v1112
    %v1166 = vunpack.c.h.b16 %v1112
    %v1167 = vunpack.c.l.b16 %v1113
    %v1168 = vunpack.c.h.b16 %v1113
    %v1169 = vunpack.c.l.b16 %v1114
    %v1170 = vunpack.c.h.b16 %v1114
    %v1171 = vunpack.c.l.b16 %v1115
    %v1172 = vunpack.c.h.b16 %v1115
    %v1173 = vunpack.c.l.b16 %v1116
    %v1174 = vunpack.c.h.b16 %v1116
    %v1175 = vunpack.c.l.b16 %v1117
    %v1176 = vunpack.c.h.b16 %v1117
    %v1177 = vunpack.c.l.b16 %v1118
    %v1178 = vunpack.c.h.b16 %v1118
    %v1179 = vpack.c.b16 %v1149, %v1147
    %v1180 = vpack.c.b16 %v1150, %v1148
    %v1181 = vpack.c.b16 %v1153, %v1151
    %v1182 = vpack.c.b16 %v1154, %v1152
    %v1183 = vpack.c.b16 %v1157, %v1155
    %v1184 = vpack.c.b16 %v1158, %v1156
    %v1185 = vpack.c.b16 %v1161, %v1159
    %v1186 = vpack.c.b16 %v1162, %v1160
    %v1187 = vpack.c.b16 %v1165, %v1163
    %v1188 = vpack.c.b16 %v1166, %v1164
    %v1189 = vpack.c.b16 %v1169, %v1167
    %v1190 = vpack.c.b16 %v1170, %v1168
    %v1191 = vpack.c.b16 %v1173, %v1171
    %v1192 = vpack.c.b16 %v1174, %v1172
    %v1193 = vpack.c.b16 %v1177, %v1175
    %v1194 = vpack.c.b16 %v1178, %v1176
    %1211 = vmatprep.subr.bf16.mxu0 %v1180
    %1212 = vmatpush1.bf16.msra.mxu0 %v1179
    %1213 = vmatprep.subr.bf16.mxu0 %v1182
    %1214 = vmatpush1.bf16.msra.mxu0 %v1181
    %1215 = vmatprep.subr.bf16.mxu0 %v1184
    %1216 = vmatpush1.bf16.msra.mxu0 %v1183
    %1217 = vmatprep.subr.bf16.mxu0 %v1186
    %1218 = vmatpush1.bf16.msra.mxu0 %v1185
    %1219 = vmatprep.subr.bf16.mxu0 %v1188
    %1220 = vmatpush1.bf16.msra.mxu0 %v1187
    %1221 = vmatprep.subr.bf16.mxu0 %v1190
    %1222 = vmatpush1.bf16.msra.mxu0 %v1189
    %1223 = vmatprep.subr.bf16.mxu0 %v1192
    %1224 = vmatpush1.bf16.msra.mxu0 %v1191
    %1225 = vmatprep.subr.bf16.mxu0 %v1194
    %1226 = vmatpush1.bf16.msra.mxu0 %v1193
    %1227 = vmatprep.subr.bf16.mxu0 0
    %1228 = vmatpush1.bf16.msra.mxu0 0
    %1229 = vmatprep.subr.bf16.mxu0 0
    %1230 = vmatpush1.bf16.msra.mxu0 0
    %1231 = vmatprep.subr.bf16.mxu0 0
    %1232 = vmatpush1.bf16.msra.mxu0 0
    %1233 = vmatprep.subr.bf16.mxu0 0
    %1234 = vmatpush1.bf16.msra.mxu0 0
    %1235 = vmatprep.subr.bf16.mxu0 0
    %1236 = vmatpush1.bf16.msra.mxu0 0
    %1237 = vmatprep.subr.bf16.mxu0 0
    %1238 = vmatpush1.bf16.msra.mxu0 0
    %1239 = vmatprep.subr.bf16.mxu0 0
    %1240 = vmatpush1.bf16.msra.mxu0 0
    %1241 = vmatprep.subr.bf16.mxu0 0
    %1242 = vmatpush1.bf16.msra.mxu0 0
    %1243 = vmatprep.mubr.bf16.mxu0 0
    %1244 = vmatmul.mubr.bf16.gmra.mrb[0].mxu0 %v1102
    %v1245 = vpop.f32.mrb[0].mxu0
    %v1246 = vadd.f32 %v1124, %v1245
    %v1247 = vpop.f32.mrb[0].mxu0
    %v1248 = vadd.f32 %v1128, %v1247
    %v1249 = vpop.f32.mrb[0].mxu0
    %v1250 = vadd.f32 %v1124, %v1249
    %v1251 = vpop.f32.mrb[0].mxu0
    %v1252 = vadd.f32 %v1128, %v1251
    %1253 = vdwg.mxu0
    %v1254 = vmax.f32 %v1246, 0.0
    %v1255 = vmax.f32 %v1248, 0.0
    %v1256 = vmax.f32 %v1250, 0.0
    %v1257 = vmax.f32 %v1252, 0.0
    %v1258 = vpack.c.bf16 %v1256, %v1254
    %v1259 = vpack.c.bf16 %v1257, %v1255
    %v1260 = vld [vmem:[#allocation10] sm:$0xf]
    %v1261 = vld [vmem:[#allocation10 + $0x4] sm:$0xf]
    %v1262 = vld [vmem:[#allocation10 + $0x8] sm:$0xf]
    %v1263 = vld [vmem:[#allocation10 + $0xc] sm:$0xf]
    %v1264 = vld [vmem:[#allocation10 + $0x10] sm:$0xf]
    %v1265 = vld [vmem:[#allocation10 + $0x14] sm:$0xf]
    %v1266 = vld [vmem:[#allocation10 + $0x18] sm:$0xf]
    %v1267 = vld [vmem:[#allocation10 + $0x1c] sm:$0xf]
    %v1268 = vld [vmem:[#allocation10 + $0x20] sm:$0xf]
    %v1269 = vld [vmem:[#allocation10 + $0x24] sm:$0xf]
    %v1270 = vld [vmem:[#allocation10 + $0x28] sm:$0xf]
    %v1271 = vld [vmem:[#allocation10 + $0x2c] sm:$0xf]
    %v1272 = vld [vmem:[#allocation10 + $0x30] sm:$0xf]
    %v1273 = vld [vmem:[#allocation10 + $0x34] sm:$0xf]
    %v1274 = vld [vmem:[#allocation10 + $0x38] sm:$0xf]
    %v1275 = vld [vmem:[#allocation10 + $0x3c] sm:$0xf]
    %v1276 = vld [vmem:[#allocation10 + $0x40] sm:$0xf]
    %v1277 = vld [vmem:[#allocation10 + $0x44] sm:$0xf]
    %v1278 = vld [vmem:[#allocation10 + $0x48] sm:$0xf]
    %v1279 = vld [vmem:[#allocation10 + $0x4c] sm:$0xf]
    %v1280 = vld [vmem:[#allocation10 + $0x50] sm:$0xf]
    %v1281 = vld [vmem:[#allocation10 + $0x54] sm:$0xf]
    %v1282 = vld [vmem:[#allocation10 + $0x58] sm:$0xf]
    %v1283 = vld [vmem:[#allocation10 + $0x5c] sm:$0xf]
    %v1284 = vld [vmem:[#allocation10 + $0x60] sm:$0xf]
    %v1285 = vld [vmem:[#allocation10 + $0x64] sm:$0xf]
    %v1286 = vld [vmem:[#allocation10 + $0x68] sm:$0xf]
    %v1287 = vld [vmem:[#allocation10 + $0x6c] sm:$0xf]
    %v1288 = vld [vmem:[#allocation10 + $0x70] sm:$0xf]
    %v1289 = vld [vmem:[#allocation10 + $0x74] sm:$0xf]
    %v1290 = vld [vmem:[#allocation10 + $0x78] sm:$0xf]
    %v1291 = vld [vmem:[#allocation10 + $0x7c] sm:$0xf]
    %v1292 = vld [vmem:[%s8] sm:$0x1]
    %v1294 = vlaneseq
    %v1295 = vshrl.u32 %v1294, 7
    %v1296 = vsub.s32 0, %v1295
    %v1297 = vrot.slane %v1292, %v1296
    %v1331 = vunpack.c.l.b16 %v1260
    %v1332 = vunpack.c.l.b16 %v1261
    %v1333 = vunpack.c.l.b16 %v1262
    %v1334 = vunpack.c.l.b16 %v1263
    %v1335 = vunpack.c.l.b16 %v1264
    %v1336 = vunpack.c.l.b16 %v1265
    %v1337 = vunpack.c.l.b16 %v1266
    %v1338 = vunpack.c.l.b16 %v1267
    %v1339 = vunpack.c.l.b16 %v1268
    %v1340 = vunpack.c.l.b16 %v1269
    %v1341 = vunpack.c.l.b16 %v1270
    %v1342 = vunpack.c.l.b16 %v1271
    %v1343 = vunpack.c.l.b16 %v1272
    %v1344 = vunpack.c.l.b16 %v1273
    %v1345 = vunpack.c.l.b16 %v1274
    %v1346 = vunpack.c.l.b16 %v1275
    %v1347 = vunpack.c.l.b16 %v1276
    %v1348 = vunpack.c.l.b16 %v1277
    %v1349 = vunpack.c.l.b16 %v1278
    %v1350 = vunpack.c.l.b16 %v1279
    %v1351 = vunpack.c.l.b16 %v1280
    %v1352 = vunpack.c.l.b16 %v1281
    %v1353 = vunpack.c.l.b16 %v1282
    %v1354 = vunpack.c.l.b16 %v1283
    %v1355 = vunpack.c.l.b16 %v1284
    %v1356 = vunpack.c.l.b16 %v1285
    %v1357 = vunpack.c.l.b16 %v1286
    %v1358 = vunpack.c.l.b16 %v1287
    %v1359 = vunpack.c.l.b16 %v1288
    %v1360 = vunpack.c.l.b16 %v1289
    %v1361 = vunpack.c.l.b16 %v1290
    %v1362 = vunpack.c.l.b16 %v1291
    %v1363 = vpack.c.b16 %v1332, %v1331
    %v1364 = vpack.c.b16 %v1334, %v1333
    %v1365 = vpack.c.b16 %v1336, %v1335
    %v1366 = vpack.c.b16 %v1338, %v1337
    %v1367 = vpack.c.b16 %v1340, %v1339
    %v1368 = vpack.c.b16 %v1342, %v1341
    %v1369 = vpack.c.b16 %v1344, %v1343
    %v1370 = vpack.c.b16 %v1346, %v1345
    %v1371 = vpack.c.b16 %v1348, %v1347
    %v1372 = vpack.c.b16 %v1350, %v1349
    %v1373 = vpack.c.b16 %v1352, %v1351
    %v1374 = vpack.c.b16 %v1354, %v1353
    %v1375 = vpack.c.b16 %v1356, %v1355
    %v1376 = vpack.c.b16 %v1358, %v1357
    %v1377 = vpack.c.b16 %v1360, %v1359
    %v1378 = vpack.c.b16 %v1362, %v1361
    %1395 = vmatprep.subr.bf16.mxu0 0
    %1396 = vmatpush1.bf16.msra.mxu0 %v1363
    %1397 = vmatprep.subr.bf16.mxu0 0
    %1398 = vmatpush1.bf16.msra.mxu0 %v1364
    %1399 = vmatprep.subr.bf16.mxu0 0
    %1400 = vmatpush1.bf16.msra.mxu0 %v1365
    %1401 = vmatprep.subr.bf16.mxu0 0
    %1402 = vmatpush1.bf16.msra.mxu0 %v1366
    %1403 = vmatprep.subr.bf16.mxu0 0
    %1404 = vmatpush1.bf16.msra.mxu0 %v1367
    %1405 = vmatprep.subr.bf16.mxu0 0
    %1406 = vmatpush1.bf16.msra.mxu0 %v1368
    %1407 = vmatprep.subr.bf16.mxu0 0
    %1408 = vmatpush1.bf16.msra.mxu0 %v1369
    %1409 = vmatprep.subr.bf16.mxu0 0
    %1410 = vmatpush1.bf16.msra.mxu0 %v1370
    %1411 = vmatprep.subr.bf16.mxu0 0
    %1412 = vmatpush1.bf16.msra.mxu0 %v1371
    %1413 = vmatprep.subr.bf16.mxu0 0
    %1414 = vmatpush1.bf16.msra.mxu0 %v1372
    %1415 = vmatprep.subr.bf16.mxu0 0
    %1416 = vmatpush1.bf16.msra.mxu0 %v1373
    %1417 = vmatprep.subr.bf16.mxu0 0
    %1418 = vmatpush1.bf16.msra.mxu0 %v1374
    %1419 = vmatprep.subr.bf16.mxu0 0
    %1420 = vmatpush1.bf16.msra.mxu0 %v1375
    %1421 = vmatprep.subr.bf16.mxu0 0
    %1422 = vmatpush1.bf16.msra.mxu0 %v1376
    %1423 = vmatprep.subr.bf16.mxu0 0
    %1424 = vmatpush1.bf16.msra.mxu0 %v1377
    %1425 = vmatprep.subr.bf16.mxu0 0
    %1426 = vmatpush1.bf16.msra.mxu0 %v1378
    %1427 = vmatprep.mubr.bf16.mxu0 %v1259
    %1428 = vmatmul.mubr.bf16.gmra.mrb[0].mxu0 %v1258
    %v1429 = vpop.f32.mrb[0].mxu0
    %v1430 = vadd.f32 %v1297, %v1429
    %v1431 = vpop.f32.mrb[0].mxu0
    %v1432 = vpop.f32.mrb[0].mxu0
    %v1433 = vadd.f32 %v1297, %v1432
    %v1434 = vpop.f32.mrb[0].mxu0
    %1435 = vdwg.mxu0
    %v1436 = vadd.f32 %v1100, %v1430
    %v1437 = vadd.f32 %v1101, %v1433
    %v1438 = vld [vmem:[%s11] sm:$0x1]
    %v1439 = vld [vmem:[%s12] sm:$0x1]
    %1440 = vadd.xlane.f32.xlu0 %v1436
    %v1441 = vpop.xlane.xlu0 %1440
    %1442 = vadd.xlane.f32.xlu0 %v1437
    %v1443 = vpop.xlane.xlu0 %1442
    %v1444 = vmul.f32 %v1441, %v1067
    %v1445 = vmul.f32 %v1443, %v1067
    %v1446 = vsub.f32 %v1436, %v1444
    %v1447 = vsub.f32 %v1437, %v1445
    %v1448 = vmul.f32 %v1446, %v1446
    %v1449 = vmul.f32 %v1447, %v1447
    %1450 = vadd.xlane.f32.xlu0 %v1448
    %v1451 = vpop.xlane.xlu0 %1450
    %1452 = vadd.xlane.f32.xlu0 %v1449
    %v1453 = vpop.xlane.xlu0 %1452
    %v1454 = vmul.f32 %v1451, %v1067
    %v1455 = vmul.f32 %v1453, %v1067
    %v1456 = vadd.f32 %v1454, 1e-05
    %v1457 = vadd.f32 %v1455, 1e-05
    %v1458 = vrsqrt.pop %v1456
    %v1459 = vrsqrt.pop %v1457
    %v1460 = vmul.f32 %v1446, %v1458
    %v1461 = vmul.f32 %v1447, %v1459
    %v1463 = vlaneseq
    %v1464 = vshrl.u32 %v1463, 7
    %v1465 = vsub.s32 0, %v1464
    %v1466 = vrot.slane %v1438, %v1465
    %v1468 = vmul.f32 %v1460, %v1466
    %v1469 = vmul.f32 %v1461, %v1466
    %v1471 = vlaneseq
    %v1472 = vshrl.u32 %v1471, 7
    %v1473 = vsub.s32 0, %v1472
    %v1474 = vrot.slane %v1439, %v1473
    %v1476 = vadd.f32 %v1468, %v1474
    %v1477 = vadd.f32 %v1469, %v1474
    %1478 = vst [vmem:[#allocation11] sm:$0xff] %v1476
    %1479 = vst [vmem:[#allocation11 + $0x8] sm:$0xff] %v1477
    // Predicated region
    $region74: #{transformer_encoder_layer.1} parent=1 // pred_check
      _
    $region75: #{transformer_encoder_layer.1} parent=1 // pred_check_branch
      %1481 = sbr.rel (0) target = $region77
    $region76: #{transformer_encoder_layer.1} parent=1 // pred_region
      %s1483 = ssub.s32 256, 256
      %1484 = vsyncadd [#allocation4], %s1483
      %s1485 = sshll.u32 [#allocation11], 4
      %s1486 = int_to_ptr.vmem [resolvable:$true] %s1485
      %1491 = dma.vmem_to_hbm [thread:$0]  %s1486, 256, %s13, [#allocation4], 128, 128, 8
    $region77: #{transformer_encoder_layer.1} parent=1 // pred_fallthru
      _
    // Predicated region
    $region78: #{transformer_encoder_layer.1} parent=1 // pred_check
      _
    $region79: #{transformer_encoder_layer.1} parent=1 // pred_check_branch
      %1493 = sbr.rel (0) target = $region81
    $region80: #{transformer_encoder_layer.1} parent=1 // pred_region
      %1494 = dma.done [#allocation4], 256
    $region81: #{transformer_encoder_layer.1} parent=1 // pred_fallthru
      _
    %1495 = vsyncpa [#allocation3], 1
    %1496 = vsyncpa [#allocation6], 1
    %1497 = vsyncpa [#allocation9], 1
    %1498 = vsyncpa [#allocation4], 1

</llo_original>
